<compile_context>
chip_gen: v6e
topology: v6e:2x2x1
jax: 0.10.0
libtpu: 0.0.40
codegen_flags: <defaults>
</compile_context>

<pallas_src>
import jax
import jax.numpy as jnp
from jax.experimental import pallas as pl
from jax.experimental.pallas import tpu as pltpu

LN_EPS = 1e-5  # PyTorch nn.LayerNorm default


def _round_up(n, m):
    return (n + m - 1) // m * m


def _linear_ln_relu(h_bf16, w_bf16, b, gamma, beta):
    """bf16 matmul (f32 accumulate) -> f32 LayerNorm (biased var, eps=1e-5)
    -> ReLU -> cast back to bf16 for the next matmul."""
    h = jnp.dot(h_bf16, w_bf16, preferred_element_type=jnp.float32) + b
    mu = jnp.mean(h, axis=-1, keepdims=True)
    var = jnp.mean((h - mu) * (h - mu), axis=-1, keepdims=True)
    h = (h - mu) * jax.lax.rsqrt(var + LN_EPS)
    h = h * gamma + beta
    h = jnp.maximum(h, 0.0)
    return h.astype(jnp.bfloat16)


def qnetwork_kernel(
    x_ref,
    w1, b1, g1, be1,
    w2, b2, g2, be2,
    w3, b3, g3, be3,
    w4, b4, g4, be4,
    w5, b5,
    o_ref,
):
    h = x_ref[...].astype(jnp.bfloat16)
    h = _linear_ln_relu(h, w1[...], b1[...], g1[...], be1[...])   # state_dim -> 128
    h = _linear_ln_relu(h, w2[...], b2[...], g2[...], be2[...])   # 128 -> 256
    h = _linear_ln_relu(h, w3[...], b3[...], g3[...], be3[...])   # 256 -> 128
    h = _linear_ln_relu(h, w4[...], b4[...], g4[...], be4[...])   # 128 -> 64
    # Final linear into the lane-padded (128-wide) output slab.
    out = jnp.dot(h, w5[...], preferred_element_type=jnp.float32) + b5[...]
    o_ref[...] = out.astype(o_ref.dtype)


def qnetwork_forward(x, params, *, batch_tile=256):
    """x: (B, state_dim) f32.  Returns (B, action_dim) f32."""
    B, S = x.shape
    A = params["b5"].shape[-1]

    # ---- lane-pad the final layer to 128 output columns (exact: zero cols) --
    A_pad = _round_up(max(A, 128), 128)
    w5 = params["w5"]
    b5 = params["b5"]
    if A_pad != A:
        w5 = jnp.pad(w5, ((0, 0), (0, A_pad - A)))
        b5 = jnp.pad(b5, ((0, 0), (0, A_pad - A)))

    # ---- bf16 weights for the MXU; biases / LN params stay f32 --------------
    w1 = params["w1"].astype(jnp.bfloat16)
    w2 = params["w2"].astype(jnp.bfloat16)
    w3 = params["w3"].astype(jnp.bfloat16)
    w4 = params["w4"].astype(jnp.bfloat16)
    w5 = w5.astype(jnp.bfloat16)

    # ---- pick a batch tile (multiple of 8) and pad the batch to it ----------
    Bp8 = _round_up(B, 8)
    tile = max(8, min(_round_up(batch_tile, 8), Bp8))
    # Keep >= 2 grid steps when the batch allows it (v7x has 2 TensorCores).
    if Bp8 >= 16 and Bp8 < 2 * tile:
        tile = _round_up(-(-Bp8 // 2), 8)
    Bp = _round_up(B, tile)
    x_p = jnp.pad(x, ((0, Bp - B), (0, 0))) if Bp != B else x
    grid = (Bp // tile,)

    param_list = [
        w1, params["b1"], params["g1"], params["be1"],
        w2, params["b2"], params["g2"], params["be2"],
        w3, params["b3"], params["g3"], params["be3"],
        w4, params["b4"], params["g4"], params["be4"],
        w5, b5,
    ]

    # Parameters: one full-array block with a constant block index -> DMA'd
    # once and kept VMEM-resident across all grid steps.
    def resident_spec(arr):
        return pl.BlockSpec(arr.shape, lambda i: (0, 0))

    in_specs = [pl.BlockSpec((tile, S), lambda i: (i, 0))] + [
        resident_spec(p) for p in param_list
    ]
    out_spec = pl.BlockSpec((tile, A_pad), lambda i: (i, 0))

    out = pl.pallas_call(
        qnetwork_kernel,
        out_shape=jax.ShapeDtypeStruct((Bp, A_pad), jnp.float32),
        grid_spec=pltpu.PrefetchScalarGridSpec(
            num_scalar_prefetch=0,
            grid=grid,
            in_specs=in_specs,
            out_specs=out_spec,
        ),
        compiler_params=pltpu.CompilerParams(
            dimension_semantics=("parallel",)
        ),
    )(x_p, *param_list)

    return out[:B, :A]


def init_params(state_dim, action_dim, key):
    """Deterministic synthetic init. Linear: small normal; LayerNorm: ones /
    zeros (PyTorch defaults). Weights stored as (in, out)."""
    dims = [state_dim, 128, 256, 128, 64, action_dim]
    params = {}
    keys = jax.random.split(key, 10)
    ki = 0
    for li in range(5):
        fan_in, fan_out = dims[li], dims[li + 1]
        wk, bk = keys[ki], keys[ki + 1]
        ki += 2
        scale = 1.0 / jnp.sqrt(jnp.float32(fan_in))
        params[f"w{li + 1}"] = (
            jax.random.normal(wk, (fan_in, fan_out), jnp.float32) * scale
        )
        params[f"b{li + 1}"] = (
            jax.random.normal(bk, (1, fan_out), jnp.float32) * 0.01
        )
        if li < 4:  # LayerNorm after the first four linears
            params[f"g{li + 1}"] = jnp.ones((1, fan_out), jnp.float32)
            params[f"be{li + 1}"] = jnp.zeros((1, fan_out), jnp.float32)
    return params


def qnetwork_reference_mixed(x, params):
    """Pure-JAX reference with the SAME precision scheme as the kernel
    (bf16 matmul operands, f32 accumulation, f32 LayerNorm)."""
    h = x
    for li in range(1, 5):
        w = params[f"w{li}"].astype(jnp.bfloat16)
        h = jnp.dot(h.astype(jnp.bfloat16), w,
                    preferred_element_type=jnp.float32) + params[f"b{li}"]
        mu = jnp.mean(h, axis=-1, keepdims=True)
        var = jnp.mean((h - mu) ** 2, axis=-1, keepdims=True)
        h = (h - mu) * jax.lax.rsqrt(var + LN_EPS)
        h = h * params[f"g{li}"] + params[f"be{li}"]
        h = jnp.maximum(h, 0.0)
    return jnp.dot(h.astype(jnp.bfloat16), params["w5"].astype(jnp.bfloat16),
                   preferred_element_type=jnp.float32) + params["b5"]


def qnetwork_reference_f32(x, params):
    """Full-f32 reference (matches the original PyTorch module's math)."""
    h = x
    for li in range(1, 5):
        h = h @ params[f"w{li}"] + params[f"b{li}"]
        mu = jnp.mean(h, axis=-1, keepdims=True)
        var = jnp.mean((h - mu) ** 2, axis=-1, keepdims=True)
        h = (h - mu) / jnp.sqrt(var + LN_EPS)
        h = h * params[f"g{li}"] + params[f"be{li}"]
        h = jnp.maximum(h, 0.0)
    return h @ params["w5"] + params["b5"]


if __name__ == "__main__":
    key = jax.random.PRNGKey(0)
    kx, kp = jax.random.split(key)

    # Small demo shapes (batch chosen to exercise batch padding + a 2-step grid).
    batch, state_dim, action_dim = 24, 16, 4
    x = jax.random.normal(kx, (batch, state_dim), jnp.float32)
    params = init_params(state_dim, action_dim, kp)

    out = qnetwork_forward(x, params, batch_tile=256)
    out = jax.block_until_ready(out)

    assert out.shape == (batch, action_dim)

    ref_mixed = qnetwork_reference_mixed(x, params)
    assert jnp.allclose(out, ref_mixed, atol=2e-3, rtol=2e-3), \
        "mismatch vs mixed-precision reference"

    ref_f32 = qnetwork_reference_f32(x, params)
    assert jnp.allclose(out, ref_f32, atol=1e-1, rtol=1e-1), \
        "mismatch vs f32 reference"

    print("KERNEL_OK")
</pallas_src>

<mosaic_0001>
module attributes {stable_mosaic.version = 11 : i64} {
  func.func @qnetwork_kernel(%arg0: i32, %arg1: memref<16x16xf32, #tpu.memory_space<vmem>>, %arg2: memref<16x128xbf16, #tpu.memory_space<vmem>>, %arg3: memref<1x128xf32, #tpu.memory_space<vmem>>, %arg4: memref<1x128xf32, #tpu.memory_space<vmem>>, %arg5: memref<1x128xf32, #tpu.memory_space<vmem>>, %arg6: memref<128x256xbf16, #tpu.memory_space<vmem>>, %arg7: memref<1x256xf32, #tpu.memory_space<vmem>>, %arg8: memref<1x256xf32, #tpu.memory_space<vmem>>, %arg9: memref<1x256xf32, #tpu.memory_space<vmem>>, %arg10: memref<256x128xbf16, #tpu.memory_space<vmem>>, %arg11: memref<1x128xf32, #tpu.memory_space<vmem>>, %arg12: memref<1x128xf32, #tpu.memory_space<vmem>>, %arg13: memref<1x128xf32, #tpu.memory_space<vmem>>, %arg14: memref<128x64xbf16, #tpu.memory_space<vmem>>, %arg15: memref<1x64xf32, #tpu.memory_space<vmem>>, %arg16: memref<1x64xf32, #tpu.memory_space<vmem>>, %arg17: memref<1x64xf32, #tpu.memory_space<vmem>>, %arg18: memref<64x128xbf16, #tpu.memory_space<vmem>>, %arg19: memref<1x128xf32, #tpu.memory_space<vmem>>, %arg20: memref<16x128xf32, #tpu.memory_space<vmem>>) attributes {dimension_semantics = [#tpu.dimension_semantics<parallel>], iteration_bounds = array<i64: 2>, scalar_prefetch = 0 : i64, scratch_operands = 0 : i64, tpu.core_type = #tpu.core_type<tc>, window_params = [{transform_indices = @transform_0, window_bounds = array<i64: 16, 16>}, {pipeline_mode = #tpu.pipeline_mode<synchronous>, transform_indices = @transform_1, window_bounds = array<i64: 16, 128>}, {pipeline_mode = #tpu.pipeline_mode<synchronous>, transform_indices = @transform_2, window_bounds = array<i64: 1, 128>}, {pipeline_mode = #tpu.pipeline_mode<synchronous>, transform_indices = @transform_3, window_bounds = array<i64: 1, 128>}, {pipeline_mode = #tpu.pipeline_mode<synchronous>, transform_indices = @transform_4, window_bounds = array<i64: 1, 128>}, {pipeline_mode = #tpu.pipeline_mode<synchronous>, transform_indices = @transform_5, window_bounds = array<i64: 128, 256>}, {pipeline_mode = #tpu.pipeline_mode<synchronous>, transform_indices = @transform_6, window_bounds = array<i64: 1, 256>}, {pipeline_mode = #tpu.pipeline_mode<synchronous>, transform_indices = @transform_7, window_bounds = array<i64: 1, 256>}, {pipeline_mode = #tpu.pipeline_mode<synchronous>, transform_indices = @transform_8, window_bounds = array<i64: 1, 256>}, {pipeline_mode = #tpu.pipeline_mode<synchronous>, transform_indices = @transform_9, window_bounds = array<i64: 256, 128>}, {pipeline_mode = #tpu.pipeline_mode<synchronous>, transform_indices = @transform_10, window_bounds = array<i64: 1, 128>}, {pipeline_mode = #tpu.pipeline_mode<synchronous>, transform_indices = @transform_11, window_bounds = array<i64: 1, 128>}, {pipeline_mode = #tpu.pipeline_mode<synchronous>, transform_indices = @transform_12, window_bounds = array<i64: 1, 128>}, {pipeline_mode = #tpu.pipeline_mode<synchronous>, transform_indices = @transform_13, window_bounds = array<i64: 128, 64>}, {pipeline_mode = #tpu.pipeline_mode<synchronous>, transform_indices = @transform_14, window_bounds = array<i64: 1, 64>}, {pipeline_mode = #tpu.pipeline_mode<synchronous>, transform_indices = @transform_15, window_bounds = array<i64: 1, 64>}, {pipeline_mode = #tpu.pipeline_mode<synchronous>, transform_indices = @transform_16, window_bounds = array<i64: 1, 64>}, {pipeline_mode = #tpu.pipeline_mode<synchronous>, transform_indices = @transform_17, window_bounds = array<i64: 64, 128>}, {pipeline_mode = #tpu.pipeline_mode<synchronous>, transform_indices = @transform_18, window_bounds = array<i64: 1, 128>}, {transform_indices = @transform_19, window_bounds = array<i64: 16, 128>}]} {
    %c0 = arith.constant 0 : index
    %c0_0 = arith.constant 0 : index
    %0 = vector.load %arg1[%c0, %c0_0] : memref<16x16xf32, #tpu.memory_space<vmem>>, vector<16x16xf32>
    %1 = arith.truncf %0 : vector<16x16xf32> to vector<16x16xbf16>
    %c0_1 = arith.constant 0 : index
    %c0_2 = arith.constant 0 : index
    %2 = vector.load %arg2[%c0_1, %c0_2] : memref<16x128xbf16, #tpu.memory_space<vmem>>, vector<16x128xbf16>
    %c0_3 = arith.constant 0 : index
    %c0_4 = arith.constant 0 : index
    %3 = vector.load %arg3[%c0_3, %c0_4] : memref<1x128xf32, #tpu.memory_space<vmem>>, vector<1x128xf32>
    %c0_5 = arith.constant 0 : index
    %c0_6 = arith.constant 0 : index
    %4 = vector.load %arg4[%c0_5, %c0_6] : memref<1x128xf32, #tpu.memory_space<vmem>>, vector<1x128xf32>
    %c0_7 = arith.constant 0 : index
    %c0_8 = arith.constant 0 : index
    %5 = vector.load %arg5[%c0_7, %c0_8] : memref<1x128xf32, #tpu.memory_space<vmem>>, vector<1x128xf32>
    %cst = arith.constant dense<0.000000e+00> : vector<16x128xf32>
    %6 = tpu.matmul %1, %2, %cst {dimension_numbers = #tpu.dot_dimension_numbers<[1], [0], [0], [1], [0, 0, 1, 1], [], []>} : vector<16x16xbf16>, vector<16x128xbf16>, vector<16x128xf32> -> vector<16x128xf32>
    %7 = vector.broadcast %3 : vector<1x128xf32> to vector<16x128xf32>
    %8 = arith.addf %6, %7 : vector<16x128xf32>
    %cst_9 = arith.constant dense<0.000000e+00> : vector<16xf32>
    %9 = vector.multi_reduction <add>, %8, %cst_9 [1] : vector<16x128xf32> to vector<16xf32>
    %10 = vector.shape_cast %9 : vector<16xf32> to vector<16x1xf32>
    %cst_10 = arith.constant 1.280000e+02 : f32
    %11 = vector.broadcast %cst_10 : f32 to vector<16x1xf32>
    %12 = arith.divf %10, %11 : vector<16x1xf32>
    %13 = vector.broadcast %12 : vector<16x1xf32> to vector<16x128xf32>
    %14 = arith.subf %8, %13 : vector<16x128xf32>
    %15 = vector.broadcast %12 : vector<16x1xf32> to vector<16x128xf32>
    %16 = arith.subf %8, %15 : vector<16x128xf32>
    %17 = arith.mulf %14, %16 : vector<16x128xf32>
    %cst_11 = arith.constant dense<0.000000e+00> : vector<16xf32>
    %18 = vector.multi_reduction <add>, %17, %cst_11 [1] : vector<16x128xf32> to vector<16xf32>
    %19 = vector.shape_cast %18 : vector<16xf32> to vector<16x1xf32>
    %cst_12 = arith.constant 1.280000e+02 : f32
    %20 = vector.broadcast %cst_12 : f32 to vector<16x1xf32>
    %21 = arith.divf %19, %20 : vector<16x1xf32>
    %22 = vector.broadcast %12 : vector<16x1xf32> to vector<16x128xf32>
    %23 = arith.subf %8, %22 : vector<16x128xf32>
    %cst_13 = arith.constant 9.99999974E-6 : f32
    %24 = vector.broadcast %cst_13 : f32 to vector<16x1xf32>
    %25 = arith.addf %21, %24 : vector<16x1xf32>
    %26 = math.rsqrt %25 : vector<16x1xf32>
    %27 = vector.broadcast %26 : vector<16x1xf32> to vector<16x128xf32>
    %28 = arith.mulf %23, %27 : vector<16x128xf32>
    %29 = vector.broadcast %4 : vector<1x128xf32> to vector<16x128xf32>
    %30 = arith.mulf %28, %29 : vector<16x128xf32>
    %31 = vector.broadcast %5 : vector<1x128xf32> to vector<16x128xf32>
    %32 = arith.addf %30, %31 : vector<16x128xf32>
    %cst_14 = arith.constant 0.000000e+00 : f32
    %33 = vector.broadcast %cst_14 : f32 to vector<16x128xf32>
    %34 = arith.maximumf %32, %33 : vector<16x128xf32>
    %35 = arith.truncf %34 : vector<16x128xf32> to vector<16x128xbf16>
    %c0_15 = arith.constant 0 : index
    %c0_16 = arith.constant 0 : index
    %36 = vector.load %arg6[%c0_15, %c0_16] : memref<128x256xbf16, #tpu.memory_space<vmem>>, vector<128x256xbf16>
    %c0_17 = arith.constant 0 : index
    %c0_18 = arith.constant 0 : index
    %37 = vector.load %arg7[%c0_17, %c0_18] : memref<1x256xf32, #tpu.memory_space<vmem>>, vector<1x256xf32>
    %c0_19 = arith.constant 0 : index
    %c0_20 = arith.constant 0 : index
    %38 = vector.load %arg8[%c0_19, %c0_20] : memref<1x256xf32, #tpu.memory_space<vmem>>, vector<1x256xf32>
    %c0_21 = arith.constant 0 : index
    %c0_22 = arith.constant 0 : index
    %39 = vector.load %arg9[%c0_21, %c0_22] : memref<1x256xf32, #tpu.memory_space<vmem>>, vector<1x256xf32>
    %cst_23 = arith.constant dense<0.000000e+00> : vector<16x256xf32>
    %40 = tpu.matmul %35, %36, %cst_23 {dimension_numbers = #tpu.dot_dimension_numbers<[1], [0], [0], [1], [0, 0, 1, 1], [], []>} : vector<16x128xbf16>, vector<128x256xbf16>, vector<16x256xf32> -> vector<16x256xf32>
    %41 = vector.broadcast %37 : vector<1x256xf32> to vector<16x256xf32>
    %42 = arith.addf %40, %41 : vector<16x256xf32>
    %cst_24 = arith.constant dense<0.000000e+00> : vector<16xf32>
    %43 = vector.multi_reduction <add>, %42, %cst_24 [1] : vector<16x256xf32> to vector<16xf32>
    %44 = vector.shape_cast %43 : vector<16xf32> to vector<16x1xf32>
    %cst_25 = arith.constant 2.560000e+02 : f32
    %45 = vector.broadcast %cst_25 : f32 to vector<16x1xf32>
    %46 = arith.divf %44, %45 : vector<16x1xf32>
    %47 = vector.broadcast %46 : vector<16x1xf32> to vector<16x256xf32>
    %48 = arith.subf %42, %47 : vector<16x256xf32>
    %49 = vector.broadcast %46 : vector<16x1xf32> to vector<16x256xf32>
    %50 = arith.subf %42, %49 : vector<16x256xf32>
    %51 = arith.mulf %48, %50 : vector<16x256xf32>
    %cst_26 = arith.constant dense<0.000000e+00> : vector<16xf32>
    %52 = vector.multi_reduction <add>, %51, %cst_26 [1] : vector<16x256xf32> to vector<16xf32>
    %53 = vector.shape_cast %52 : vector<16xf32> to vector<16x1xf32>
    %cst_27 = arith.constant 2.560000e+02 : f32
    %54 = vector.broadcast %cst_27 : f32 to vector<16x1xf32>
    %55 = arith.divf %53, %54 : vector<16x1xf32>
    %56 = vector.broadcast %46 : vector<16x1xf32> to vector<16x256xf32>
    %57 = arith.subf %42, %56 : vector<16x256xf32>
    %cst_28 = arith.constant 9.99999974E-6 : f32
    %58 = vector.broadcast %cst_28 : f32 to vector<16x1xf32>
    %59 = arith.addf %55, %58 : vector<16x1xf32>
    %60 = math.rsqrt %59 : vector<16x1xf32>
    %61 = vector.broadcast %60 : vector<16x1xf32> to vector<16x256xf32>
    %62 = arith.mulf %57, %61 : vector<16x256xf32>
    %63 = vector.broadcast %38 : vector<1x256xf32> to vector<16x256xf32>
    %64 = arith.mulf %62, %63 : vector<16x256xf32>
    %65 = vector.broadcast %39 : vector<1x256xf32> to vector<16x256xf32>
    %66 = arith.addf %64, %65 : vector<16x256xf32>
    %cst_29 = arith.constant 0.000000e+00 : f32
    %67 = vector.broadcast %cst_29 : f32 to vector<16x256xf32>
    %68 = arith.maximumf %66, %67 : vector<16x256xf32>
    %69 = arith.truncf %68 : vector<16x256xf32> to vector<16x256xbf16>
    %c0_30 = arith.constant 0 : index
    %c0_31 = arith.constant 0 : index
    %70 = vector.load %arg10[%c0_30, %c0_31] : memref<256x128xbf16, #tpu.memory_space<vmem>>, vector<256x128xbf16>
    %c0_32 = arith.constant 0 : index
    %c0_33 = arith.constant 0 : index
    %71 = vector.load %arg11[%c0_32, %c0_33] : memref<1x128xf32, #tpu.memory_space<vmem>>, vector<1x128xf32>
    %c0_34 = arith.constant 0 : index
    %c0_35 = arith.constant 0 : index
    %72 = vector.load %arg12[%c0_34, %c0_35] : memref<1x128xf32, #tpu.memory_space<vmem>>, vector<1x128xf32>
    %c0_36 = arith.constant 0 : index
    %c0_37 = arith.constant 0 : index
    %73 = vector.load %arg13[%c0_36, %c0_37] : memref<1x128xf32, #tpu.memory_space<vmem>>, vector<1x128xf32>
    %cst_38 = arith.constant dense<0.000000e+00> : vector<16x128xf32>
    %74 = tpu.matmul %69, %70, %cst_38 {dimension_numbers = #tpu.dot_dimension_numbers<[1], [0], [0], [1], [0, 0, 1, 1], [], []>} : vector<16x256xbf16>, vector<256x128xbf16>, vector<16x128xf32> -> vector<16x128xf32>
    %75 = vector.broadcast %71 : vector<1x128xf32> to vector<16x128xf32>
    %76 = arith.addf %74, %75 : vector<16x128xf32>
    %cst_39 = arith.constant dense<0.000000e+00> : vector<16xf32>
    %77 = vector.multi_reduction <add>, %76, %cst_39 [1] : vector<16x128xf32> to vector<16xf32>
    %78 = vector.shape_cast %77 : vector<16xf32> to vector<16x1xf32>
    %cst_40 = arith.constant 1.280000e+02 : f32
    %79 = vector.broadcast %cst_40 : f32 to vector<16x1xf32>
    %80 = arith.divf %78, %79 : vector<16x1xf32>
    %81 = vector.broadcast %80 : vector<16x1xf32> to vector<16x128xf32>
    %82 = arith.subf %76, %81 : vector<16x128xf32>
    %83 = vector.broadcast %80 : vector<16x1xf32> to vector<16x128xf32>
    %84 = arith.subf %76, %83 : vector<16x128xf32>
    %85 = arith.mulf %82, %84 : vector<16x128xf32>
    %cst_41 = arith.constant dense<0.000000e+00> : vector<16xf32>
    %86 = vector.multi_reduction <add>, %85, %cst_41 [1] : vector<16x128xf32> to vector<16xf32>
    %87 = vector.shape_cast %86 : vector<16xf32> to vector<16x1xf32>
    %cst_42 = arith.constant 1.280000e+02 : f32
    %88 = vector.broadcast %cst_42 : f32 to vector<16x1xf32>
    %89 = arith.divf %87, %88 : vector<16x1xf32>
    %90 = vector.broadcast %80 : vector<16x1xf32> to vector<16x128xf32>
    %91 = arith.subf %76, %90 : vector<16x128xf32>
    %cst_43 = arith.constant 9.99999974E-6 : f32
    %92 = vector.broadcast %cst_43 : f32 to vector<16x1xf32>
    %93 = arith.addf %89, %92 : vector<16x1xf32>
    %94 = math.rsqrt %93 : vector<16x1xf32>
    %95 = vector.broadcast %94 : vector<16x1xf32> to vector<16x128xf32>
    %96 = arith.mulf %91, %95 : vector<16x128xf32>
    %97 = vector.broadcast %72 : vector<1x128xf32> to vector<16x128xf32>
    %98 = arith.mulf %96, %97 : vector<16x128xf32>
    %99 = vector.broadcast %73 : vector<1x128xf32> to vector<16x128xf32>
    %100 = arith.addf %98, %99 : vector<16x128xf32>
    %cst_44 = arith.constant 0.000000e+00 : f32
    %101 = vector.broadcast %cst_44 : f32 to vector<16x128xf32>
    %102 = arith.maximumf %100, %101 : vector<16x128xf32>
    %103 = arith.truncf %102 : vector<16x128xf32> to vector<16x128xbf16>
    %c0_45 = arith.constant 0 : index
    %c0_46 = arith.constant 0 : index
    %104 = vector.load %arg14[%c0_45, %c0_46] : memref<128x64xbf16, #tpu.memory_space<vmem>>, vector<128x64xbf16>
    %c0_47 = arith.constant 0 : index
    %c0_48 = arith.constant 0 : index
    %105 = vector.load %arg15[%c0_47, %c0_48] : memref<1x64xf32, #tpu.memory_space<vmem>>, vector<1x64xf32>
    %c0_49 = arith.constant 0 : index
    %c0_50 = arith.constant 0 : index
    %106 = vector.load %arg16[%c0_49, %c0_50] : memref<1x64xf32, #tpu.memory_space<vmem>>, vector<1x64xf32>
    %c0_51 = arith.constant 0 : index
    %c0_52 = arith.constant 0 : index
    %107 = vector.load %arg17[%c0_51, %c0_52] : memref<1x64xf32, #tpu.memory_space<vmem>>, vector<1x64xf32>
    %cst_53 = arith.constant dense<0.000000e+00> : vector<16x64xf32>
    %108 = tpu.matmul %103, %104, %cst_53 {dimension_numbers = #tpu.dot_dimension_numbers<[1], [0], [0], [1], [0, 0, 1, 1], [], []>} : vector<16x128xbf16>, vector<128x64xbf16>, vector<16x64xf32> -> vector<16x64xf32>
    %109 = vector.broadcast %105 : vector<1x64xf32> to vector<16x64xf32>
    %110 = arith.addf %108, %109 : vector<16x64xf32>
    %cst_54 = arith.constant dense<0.000000e+00> : vector<16xf32>
    %111 = vector.multi_reduction <add>, %110, %cst_54 [1] : vector<16x64xf32> to vector<16xf32>
    %112 = vector.shape_cast %111 : vector<16xf32> to vector<16x1xf32>
    %cst_55 = arith.constant 6.400000e+01 : f32
    %113 = vector.broadcast %cst_55 : f32 to vector<16x1xf32>
    %114 = arith.divf %112, %113 : vector<16x1xf32>
    %115 = vector.broadcast %114 : vector<16x1xf32> to vector<16x64xf32>
    %116 = arith.subf %110, %115 : vector<16x64xf32>
    %117 = vector.broadcast %114 : vector<16x1xf32> to vector<16x64xf32>
    %118 = arith.subf %110, %117 : vector<16x64xf32>
    %119 = arith.mulf %116, %118 : vector<16x64xf32>
    %cst_56 = arith.constant dense<0.000000e+00> : vector<16xf32>
    %120 = vector.multi_reduction <add>, %119, %cst_56 [1] : vector<16x64xf32> to vector<16xf32>
    %121 = vector.shape_cast %120 : vector<16xf32> to vector<16x1xf32>
    %cst_57 = arith.constant 6.400000e+01 : f32
    %122 = vector.broadcast %cst_57 : f32 to vector<16x1xf32>
    %123 = arith.divf %121, %122 : vector<16x1xf32>
    %124 = vector.broadcast %114 : vector<16x1xf32> to vector<16x64xf32>
    %125 = arith.subf %110, %124 : vector<16x64xf32>
    %cst_58 = arith.constant 9.99999974E-6 : f32
    %126 = vector.broadcast %cst_58 : f32 to vector<16x1xf32>
    %127 = arith.addf %123, %126 : vector<16x1xf32>
    %128 = math.rsqrt %127 : vector<16x1xf32>
    %129 = vector.broadcast %128 : vector<16x1xf32> to vector<16x64xf32>
    %130 = arith.mulf %125, %129 : vector<16x64xf32>
    %131 = vector.broadcast %106 : vector<1x64xf32> to vector<16x64xf32>
    %132 = arith.mulf %130, %131 : vector<16x64xf32>
    %133 = vector.broadcast %107 : vector<1x64xf32> to vector<16x64xf32>
    %134 = arith.addf %132, %133 : vector<16x64xf32>
    %cst_59 = arith.constant 0.000000e+00 : f32
    %135 = vector.broadcast %cst_59 : f32 to vector<16x64xf32>
    %136 = arith.maximumf %134, %135 : vector<16x64xf32>
    %137 = arith.truncf %136 : vector<16x64xf32> to vector<16x64xbf16>
    %c0_60 = arith.constant 0 : index
    %c0_61 = arith.constant 0 : index
    %138 = vector.load %arg18[%c0_60, %c0_61] : memref<64x128xbf16, #tpu.memory_space<vmem>>, vector<64x128xbf16>
    %cst_62 = arith.constant dense<0.000000e+00> : vector<16x128xf32>
    %139 = tpu.matmul %137, %138, %cst_62 {dimension_numbers = #tpu.dot_dimension_numbers<[1], [0], [0], [1], [0, 0, 1, 1], [], []>} : vector<16x64xbf16>, vector<64x128xbf16>, vector<16x128xf32> -> vector<16x128xf32>
    %c0_63 = arith.constant 0 : index
    %c0_64 = arith.constant 0 : index
    %140 = vector.load %arg19[%c0_63, %c0_64] : memref<1x128xf32, #tpu.memory_space<vmem>>, vector<1x128xf32>
    %141 = vector.broadcast %140 : vector<1x128xf32> to vector<16x128xf32>
    %142 = arith.addf %139, %141 : vector<16x128xf32>
    %c0_65 = arith.constant 0 : index
    %c0_66 = arith.constant 0 : index
    %143 = vector.load %arg20[%c0_65, %c0_66] : memref<16x128xf32, #tpu.memory_space<vmem>>, vector<16x128xf32>
    tpu.vector_store %arg20[%c0_65, %c0_66], %142 {strides = array<i32>} : memref<16x128xf32, #tpu.memory_space<vmem>>, vector<16x128xf32>,
    return
  }
  func.func @transform_0(%arg0: i32) -> (i32, i32) {
    %c0_i32 = arith.constant 0 : i32
    %c0_i32_0 = arith.constant 0 : i32
    return %arg0, %c0_i32 : i32, i32
  }
  func.func @transform_1(%arg0: i32) -> (i32, i32) {
    %c0_i32 = arith.constant 0 : i32
    %c0_i32_0 = arith.constant 0 : i32
    %c0_i32_1 = arith.constant 0 : i32
    return %c0_i32, %c0_i32_0 : i32, i32
  }
  func.func @transform_2(%arg0: i32) -> (i32, i32) {
    %c0_i32 = arith.constant 0 : i32
    %c0_i32_0 = arith.constant 0 : i32
    %c0_i32_1 = arith.constant 0 : i32
    return %c0_i32, %c0_i32_0 : i32, i32
  }
  func.func @transform_3(%arg0: i32) -> (i32, i32) {
    %c0_i32 = arith.constant 0 : i32
    %c0_i32_0 = arith.constant 0 : i32
    %c0_i32_1 = arith.constant 0 : i32
    return %c0_i32, %c0_i32_0 : i32, i32
  }
  func.func @transform_4(%arg0: i32) -> (i32, i32) {
    %c0_i32 = arith.constant 0 : i32
    %c0_i32_0 = arith.constant 0 : i32
    %c0_i32_1 = arith.constant 0 : i32
    return %c0_i32, %c0_i32_0 : i32, i32
  }
  func.func @transform_5(%arg0: i32) -> (i32, i32) {
    %c0_i32 = arith.constant 0 : i32
    %c0_i32_0 = arith.constant 0 : i32
    %c0_i32_1 = arith.constant 0 : i32
    return %c0_i32, %c0_i32_0 : i32, i32
  }
  func.func @transform_6(%arg0: i32) -> (i32, i32) {
    %c0_i32 = arith.constant 0 : i32
    %c0_i32_0 = arith.constant 0 : i32
    %c0_i32_1 = arith.constant 0 : i32
    return %c0_i32, %c0_i32_0 : i32, i32
  }
  func.func @transform_7(%arg0: i32) -> (i32, i32) {
    %c0_i32 = arith.constant 0 : i32
    %c0_i32_0 = arith.constant 0 : i32
    %c0_i32_1 = arith.constant 0 : i32
    return %c0_i32, %c0_i32_0 : i32, i32
  }
  func.func @transform_8(%arg0: i32) -> (i32, i32) {
    %c0_i32 = arith.constant 0 : i32
    %c0_i32_0 = arith.constant 0 : i32
    %c0_i32_1 = arith.constant 0 : i32
    return %c0_i32, %c0_i32_0 : i32, i32
  }
  func.func @transform_9(%arg0: i32) -> (i32, i32) {
    %c0_i32 = arith.constant 0 : i32
    %c0_i32_0 = arith.constant 0 : i32
    %c0_i32_1 = arith.constant 0 : i32
    return %c0_i32, %c0_i32_0 : i32, i32
  }
  func.func @transform_10(%arg0: i32) -> (i32, i32) {
    %c0_i32 = arith.constant 0 : i32
    %c0_i32_0 = arith.constant 0 : i32
    %c0_i32_1 = arith.constant 0 : i32
    return %c0_i32, %c0_i32_0 : i32, i32
  }
  func.func @transform_11(%arg0: i32) -> (i32, i32) {
    %c0_i32 = arith.constant 0 : i32
    %c0_i32_0 = arith.constant 0 : i32
    %c0_i32_1 = arith.constant 0 : i32
    return %c0_i32, %c0_i32_0 : i32, i32
  }
  func.func @transform_12(%arg0: i32) -> (i32, i32) {
    %c0_i32 = arith.constant 0 : i32
    %c0_i32_0 = arith.constant 0 : i32
    %c0_i32_1 = arith.constant 0 : i32
    return %c0_i32, %c0_i32_0 : i32, i32
  }
  func.func @transform_13(%arg0: i32) -> (i32, i32) {
    %c0_i32 = arith.constant 0 : i32
    %c0_i32_0 = arith.constant 0 : i32
    %c0_i32_1 = arith.constant 0 : i32
    return %c0_i32, %c0_i32_0 : i32, i32
  }
  func.func @transform_14(%arg0: i32) -> (i32, i32) {
    %c0_i32 = arith.constant 0 : i32
    %c0_i32_0 = arith.constant 0 : i32
    %c0_i32_1 = arith.constant 0 : i32
    return %c0_i32, %c0_i32_0 : i32, i32
  }
  func.func @transform_15(%arg0: i32) -> (i32, i32) {
    %c0_i32 = arith.constant 0 : i32
    %c0_i32_0 = arith.constant 0 : i32
    %c0_i32_1 = arith.constant 0 : i32
    return %c0_i32, %c0_i32_0 : i32, i32
  }
  func.func @transform_16(%arg0: i32) -> (i32, i32) {
    %c0_i32 = arith.constant 0 : i32
    %c0_i32_0 = arith.constant 0 : i32
    %c0_i32_1 = arith.constant 0 : i32
    return %c0_i32, %c0_i32_0 : i32, i32
  }
  func.func @transform_17(%arg0: i32) -> (i32, i32) {
    %c0_i32 = arith.constant 0 : i32
    %c0_i32_0 = arith.constant 0 : i32
    %c0_i32_1 = arith.constant 0 : i32
    return %c0_i32, %c0_i32_0 : i32, i32
  }
  func.func @transform_18(%arg0: i32) -> (i32, i32) {
    %c0_i32 = arith.constant 0 : i32
    %c0_i32_0 = arith.constant 0 : i32
    %c0_i32_1 = arith.constant 0 : i32
    return %c0_i32, %c0_i32_0 : i32, i32
  }
  func.func @transform_19(%arg0: i32) -> (i32, i32) {
    %c0_i32 = arith.constant 0 : i32
    %c0_i32_0 = arith.constant 0 : i32
    return %arg0, %c0_i32 : i32, i32
  }
}

</mosaic_0001>

<llo_original>
// kernel: tpu_custom_call.1
$region0: #{tpu_custom_call.1}
  #allocation0 [shape = 'u32[]', space=smem, size = 0x4, offset = 0x4, fixed_abs, tag = 'smem constant byte address 0x4 - core index']
  #allocation1 [shape = 'u32[144,128]{1,0:T(1,128)}', space=vmem, size = 0x12000, scoped, tag = 'internal scratch']
  %s0 = inlined_call_operand.vmem [shape: f32[32,16], index: 0, kind: input, shape index: {}]
  %s1 = inlined_call_operand.hbm [shape: bf16[16,128], index: 1, kind: input, shape index: {}]
  %s2 = inlined_call_operand.hbm [shape: f32[1,128], index: 2, kind: input, shape index: {}]
  %s3 = inlined_call_operand.hbm [shape: f32[1,128], index: 3, kind: input, shape index: {}]
  %s4 = inlined_call_operand.hbm [shape: f32[1,128], index: 4, kind: input, shape index: {}]
  %s5 = inlined_call_operand.vmem [shape: bf16[128,256], index: 5, kind: input, shape index: {}]
  %s6 = inlined_call_operand.hbm [shape: f32[1,256], index: 6, kind: input, shape index: {}]
  %s7 = inlined_call_operand.hbm [shape: f32[1,256], index: 7, kind: input, shape index: {}]
  %s8 = inlined_call_operand.hbm [shape: f32[1,256], index: 8, kind: input, shape index: {}]
  %s9 = inlined_call_operand.hbm [shape: bf16[256,128], index: 9, kind: input, shape index: {}]
  %s10 = inlined_call_operand.vmem [shape: f32[1,128], index: 10, kind: input, shape index: {}]
  %s11 = inlined_call_operand.vmem [shape: f32[1,128], index: 11, kind: input, shape index: {}]
  %s12 = inlined_call_operand.vmem [shape: f32[1,128], index: 12, kind: input, shape index: {}]
  %s13 = inlined_call_operand.vmem [shape: bf16[128,64], index: 13, kind: input, shape index: {}]
  %s14 = inlined_call_operand.vmem [shape: f32[1,64], index: 14, kind: input, shape index: {}]
  %s15 = inlined_call_operand.vmem [shape: f32[1,64], index: 15, kind: input, shape index: {}]
  %s16 = inlined_call_operand.vmem [shape: f32[1,64], index: 16, kind: input, shape index: {}]
  %s17 = inlined_call_operand.hbm [shape: bf16[64,128], index: 17, kind: input, shape index: {}]
  %s18 = inlined_call_operand.vmem [shape: f32[1,128], index: 18, kind: input, shape index: {}]
  %s19 = inlined_call_operand.hbm [shape: f32[32,128], index: 19, kind: output, shape index: {}]
  %s20 = sld [smem:[#allocation0]]
  $region145: #{tpu_custom_call.1} parent=0
    _
  %s22 = ssub.s32 1, %s20
  %s23 = scalar_select 0, %s22, %s20
  $region1: #{tpu_custom_call.1} parent=0
    #allocation2 [shape = 'u8[4096]{0}', space=vmem, size = 0x1000, scoped, tag = 'input window, operand 1, single buffered']
    #allocation3 [shape = 's32[2]{0}', space=sflag, size = 0x8, scoped, tag = 'scoped memory for tpu_custom_call.1']
    #allocation4 [shape = 's32[2]{0}', space=sflag, size = 0x8, scoped, tag = 'scoped memory for tpu_custom_call.1']
    #allocation5 [shape = 'u8[512]{0}', space=vmem, size = 0x400, scoped, tag = 'input window, operand 2, single buffered']
    #allocation6 [shape = 's32[1]{0}', space=sflag, size = 0x4, scoped, tag = 'scoped memory for tpu_custom_call.1']
    #allocation7 [shape = 'u8[512]{0}', space=vmem, size = 0x400, scoped, tag = 'input window, operand 3, single buffered']
    #allocation8 [shape = 'u8[512]{0}', space=vmem, size = 0x400, scoped, tag = 'input window, operand 4, single buffered']
    #allocation9 [shape = 's32[1]{0}', space=sflag, size = 0x4, scoped, tag = 'scoped memory for tpu_custom_call.1']
    #allocation10 [shape = 'u8[1024]{0}', space=vmem, size = 0x400, scoped, tag = 'input window, operand 6, single buffered']
    #allocation11 [shape = 'u8[1024]{0}', space=vmem, size = 0x400, scoped, tag = 'input window, operand 7, single buffered']
    #allocation12 [shape = 's32[1]{0}', space=sflag, size = 0x4, scoped, tag = 'scoped memory for tpu_custom_call.1']
    #allocation13 [shape = 'u8[1024]{0}', space=vmem, size = 0x400, scoped, tag = 'input window, operand 8, single buffered']
    #allocation14 [shape = 'u8[65536]{0}', space=vmem, size = 0x10000, scoped, tag = 'input window, operand 9, single buffered']
    #allocation15 [shape = 's32[1]{0}', space=sflag, size = 0x4, scoped, tag = 'scoped memory for tpu_custom_call.1']
    #allocation16 [shape = 'u8[16384]{0}', space=vmem, size = 0x4000, scoped, tag = 'input window, operand 17, single buffered']
    #allocation17 [shape = 'u8[16384]{0}', space=vmem, size = 0x4000, scoped, tag = 'output window, operand 0']
    %24 = vsyncpa [#allocation3], 0
    %25 = vsyncpa [#allocation6], 0
    %26 = vsyncpa [#allocation9], 0
    %27 = vsyncpa [#allocation12], 0
    %28 = vsyncpa [#allocation15], 0
    %29 = vsyncpa [#allocation4], 0
    %s30 = scalar_lea.sflag [#allocation4], 1
    %31 = vsyncpa %s30, 0
    loop: start=0, step=1, limit=4
    $region2: #{tpu_custom_call.1} parent=1 // loop_pre_header
      _
    $region3: #{tpu_custom_call.1} parent=1 // loop_header
      %s33 = sphi 0, %s37
      %p34 = scmp.ge.s32.totalorder %s33, 4
      %s43 = sphi 0, %s45
      %s46 = sphi 0, %s43
      %s47 = sphi 0, %s46
      %s63 = sphi 0, %s47
      %s67 = sphi 0, %s67
      %s69 = sphi 0, %s67
      %s70 = sphi 0, %s69
      %s84 = sphi 0, %s70
      %s88 = sphi 0, %s88
      %s90 = sphi 0, %s88
      %s91 = sphi 0, %s90
      %s105 = sphi 0, %s91
      %s109 = sphi 0, %s109
      %s111 = sphi 0, %s109
      %s112 = sphi 0, %s111
      %s126 = sphi 0, %s112
      %s130 = sphi 0, %s130
      %s132 = sphi 0, %s130
      %s133 = sphi 0, %s132
      %s147 = sphi 0, %s133
      %s151 = sphi 0, %s151
      %s153 = sphi 0, %s151
      %s154 = sphi 0, %s153
      %s168 = sphi 0, %s154
      %s172 = sphi 0, %s172
      %s174 = sphi 0, %s172
      %s175 = sphi 0, %s174
      %s189 = sphi 0, %s175
      %s193 = sphi 0, %s193
      %s195 = sphi 0, %s193
      %s196 = sphi 0, %s195
      %s210 = sphi 0, %s196
      %s214 = sphi 0, %s214
      %s216 = sphi 0, %s214
      %s217 = sphi 0, %s216
      %s231 = sphi 0, %s217
      %s235 = sphi 0, %s235
      %s237 = sphi 0, %s235
      %s238 = sphi 0, %s237
      %s252 = sphi 0, %s238
      %s256 = sphi 0, %s256
      %s258 = sphi 0, %s256
      %s259 = sphi 0, %s258
      %s273 = sphi 0, %s259
      %s277 = sphi 0, %s277
      %s279 = sphi 0, %s277
      %s280 = sphi 0, %s279
      %s294 = sphi 0, %s280
      %s298 = sphi 0, %s298
      %s300 = sphi 0, %s298
      %s301 = sphi 0, %s300
      %s315 = sphi 0, %s301
      %s319 = sphi 0, %s319
      %s321 = sphi 0, %s319
      %s322 = sphi 0, %s321
      %s336 = sphi 0, %s322
      %s340 = sphi 0, %s340
      %s342 = sphi 0, %s340
      %s343 = sphi 0, %s342
      %s357 = sphi 0, %s343
      %s361 = sphi 0, %s361
      %s363 = sphi 0, %s361
      %s364 = sphi 0, %s363
      %s378 = sphi 0, %s364
      %s382 = sphi 0, %s382
      %s384 = sphi 0, %s382
      %s385 = sphi 0, %s384
      %s399 = sphi 0, %s385
      %s403 = sphi 0, %s403
      %s405 = sphi 0, %s403
      %s406 = sphi 0, %s405
      %s420 = sphi 0, %s406
      %s424 = sphi 0, %s424
      %s426 = sphi 0, %s424
      %s427 = sphi 0, %s426
      %s441 = sphi 0, %s427
      %s447 = sphi 0, %s449
      %s450 = sphi 0, %s447
      %s451 = sphi 0, %s450
      %s467 = sphi 0, %s451
    $region4: #{tpu_custom_call.1} parent=1 // loop_header_branch
      %36 = sbr.rel (%p34) target = $region8
    $region5: #{tpu_custom_call.1} parent=1 // loop_body
      %s38 = ssub.s32 %s33, 1
      %s39 = ssub.s32 %s33, 2
      %s40 = sadd.s32 %s33, 1
      %s41 = ssub.s32 %s33, %s40
      %p42 = scmp.eq.s32.totalorder %s41, 0
      %s44 = sadd.s32 %s43, 1
      %s45 = scalar_select %p42, %s43, %s44
      %p48 = pneg %p42
      %p49 = scmp.eq.s32.totalorder %s33, 1
      %p50 = por %p48, %p49
      %p51 = scmp.ne.s32.totalorder %s43, %s46
      %p52 = scmp.eq.s32.totalorder %s33, 0
      %p53 = por %p51, %p52
      %p54 = scmp.ne.s32.totalorder %s43, %s46
      %p55 = scmp.eq.s32.totalorder %s38, 1
      %p56 = por %p54, %p55
      %p57 = scmp.ne.s32.totalorder %s46, %s47
      %p58 = scmp.eq.s32.totalorder %s38, 0
      %p59 = por %p57, %p58
      %p60 = scmp.ne.s32.totalorder %s46, %s47
      %p61 = scmp.eq.s32.totalorder %s39, 1
      %p62 = por %p60, %p61
      %p64 = scmp.ne.s32.totalorder %s47, %s63
      %p65 = scmp.eq.s32.totalorder %s39, 0
      %p66 = por %p64, %p65
      %s68 = sadd.s32 %s67, 1
      %p71 = scmp.eq.s32.totalorder %s33, 1
      %p72 = scmp.ne.s32.totalorder %s67, %s69
      %p73 = scmp.eq.s32.totalorder %s33, 0
      %p74 = por %p72, %p73
      %p75 = scmp.ne.s32.totalorder %s67, %s69
      %p76 = scmp.eq.s32.totalorder %s38, 1
      %p77 = por %p75, %p76
      %p78 = scmp.ne.s32.totalorder %s69, %s70
      %p79 = scmp.eq.s32.totalorder %s38, 0
      %p80 = por %p78, %p79
      %p81 = scmp.ne.s32.totalorder %s69, %s70
      %p82 = scmp.eq.s32.totalorder %s39, 1
      %p83 = por %p81, %p82
      %p85 = scmp.ne.s32.totalorder %s70, %s84
      %p86 = scmp.eq.s32.totalorder %s39, 0
      %p87 = por %p85, %p86
      %s89 = sadd.s32 %s88, 1
      %p92 = scmp.eq.s32.totalorder %s33, 1
      %p93 = scmp.ne.s32.totalorder %s88, %s90
      %p94 = scmp.eq.s32.totalorder %s33, 0
      %p95 = por %p93, %p94
      %p96 = scmp.ne.s32.totalorder %s88, %s90
      %p97 = scmp.eq.s32.totalorder %s38, 1
      %p98 = por %p96, %p97
      %p99 = scmp.ne.s32.totalorder %s90, %s91
      %p100 = scmp.eq.s32.totalorder %s38, 0
      %p101 = por %p99, %p100
      %p102 = scmp.ne.s32.totalorder %s90, %s91
      %p103 = scmp.eq.s32.totalorder %s39, 1
      %p104 = por %p102, %p103
      %p106 = scmp.ne.s32.totalorder %s91, %s105
      %p107 = scmp.eq.s32.totalorder %s39, 0
      %p108 = por %p106, %p107
      %s110 = sadd.s32 %s109, 1
      %p113 = scmp.eq.s32.totalorder %s33, 1
      %p114 = scmp.ne.s32.totalorder %s109, %s111
      %p115 = scmp.eq.s32.totalorder %s33, 0
      %p116 = por %p114, %p115
      %p117 = scmp.ne.s32.totalorder %s109, %s111
      %p118 = scmp.eq.s32.totalorder %s38, 1
      %p119 = por %p117, %p118
      %p120 = scmp.ne.s32.totalorder %s111, %s112
      %p121 = scmp.eq.s32.totalorder %s38, 0
      %p122 = por %p120, %p121
      %p123 = scmp.ne.s32.totalorder %s111, %s112
      %p124 = scmp.eq.s32.totalorder %s39, 1
      %p125 = por %p123, %p124
      %p127 = scmp.ne.s32.totalorder %s112, %s126
      %p128 = scmp.eq.s32.totalorder %s39, 0
      %p129 = por %p127, %p128
      %s131 = sadd.s32 %s130, 1
      %p134 = scmp.eq.s32.totalorder %s33, 1
      %p135 = scmp.ne.s32.totalorder %s130, %s132
      %p136 = scmp.eq.s32.totalorder %s33, 0
      %p137 = por %p135, %p136
      %p138 = scmp.ne.s32.totalorder %s130, %s132
      %p139 = scmp.eq.s32.totalorder %s38, 1
      %p140 = por %p138, %p139
      %p141 = scmp.ne.s32.totalorder %s132, %s133
      %p142 = scmp.eq.s32.totalorder %s38, 0
      %p143 = por %p141, %p142
      %p144 = scmp.ne.s32.totalorder %s132, %s133
      %p145 = scmp.eq.s32.totalorder %s39, 1
      %p146 = por %p144, %p145
      %p148 = scmp.ne.s32.totalorder %s133, %s147
      %p149 = scmp.eq.s32.totalorder %s39, 0
      %p150 = por %p148, %p149
      %s152 = sadd.s32 %s151, 1
      %p155 = scmp.eq.s32.totalorder %s33, 1
      %p156 = scmp.ne.s32.totalorder %s151, %s153
      %p157 = scmp.eq.s32.totalorder %s33, 0
      %p158 = por %p156, %p157
      %p159 = scmp.ne.s32.totalorder %s151, %s153
      %p160 = scmp.eq.s32.totalorder %s38, 1
      %p161 = por %p159, %p160
      %p162 = scmp.ne.s32.totalorder %s153, %s154
      %p163 = scmp.eq.s32.totalorder %s38, 0
      %p164 = por %p162, %p163
      %p165 = scmp.ne.s32.totalorder %s153, %s154
      %p166 = scmp.eq.s32.totalorder %s39, 1
      %p167 = por %p165, %p166
      %p169 = scmp.ne.s32.totalorder %s154, %s168
      %p170 = scmp.eq.s32.totalorder %s39, 0
      %p171 = por %p169, %p170
      %s173 = sadd.s32 %s172, 1
      %p176 = scmp.eq.s32.totalorder %s33, 1
      %p177 = scmp.ne.s32.totalorder %s172, %s174
      %p178 = scmp.eq.s32.totalorder %s33, 0
      %p179 = por %p177, %p178
      %p180 = scmp.ne.s32.totalorder %s172, %s174
      %p181 = scmp.eq.s32.totalorder %s38, 1
      %p182 = por %p180, %p181
      %p183 = scmp.ne.s32.totalorder %s174, %s175
      %p184 = scmp.eq.s32.totalorder %s38, 0
      %p185 = por %p183, %p184
      %p186 = scmp.ne.s32.totalorder %s174, %s175
      %p187 = scmp.eq.s32.totalorder %s39, 1
      %p188 = por %p186, %p187
      %p190 = scmp.ne.s32.totalorder %s175, %s189
      %p191 = scmp.eq.s32.totalorder %s39, 0
      %p192 = por %p190, %p191
      %s194 = sadd.s32 %s193, 1
      %p197 = scmp.eq.s32.totalorder %s33, 1
      %p198 = scmp.ne.s32.totalorder %s193, %s195
      %p199 = scmp.eq.s32.totalorder %s33, 0
      %p200 = por %p198, %p199
      %p201 = scmp.ne.s32.totalorder %s193, %s195
      %p202 = scmp.eq.s32.totalorder %s38, 1
      %p203 = por %p201, %p202
      %p204 = scmp.ne.s32.totalorder %s195, %s196
      %p205 = scmp.eq.s32.totalorder %s38, 0
      %p206 = por %p204, %p205
      %p207 = scmp.ne.s32.totalorder %s195, %s196
      %p208 = scmp.eq.s32.totalorder %s39, 1
      %p209 = por %p207, %p208
      %p211 = scmp.ne.s32.totalorder %s196, %s210
      %p212 = scmp.eq.s32.totalorder %s39, 0
      %p213 = por %p211, %p212
      %s215 = sadd.s32 %s214, 1
      %p218 = scmp.eq.s32.totalorder %s33, 1
      %p219 = scmp.ne.s32.totalorder %s214, %s216
      %p220 = scmp.eq.s32.totalorder %s33, 0
      %p221 = por %p219, %p220
      %p222 = scmp.ne.s32.totalorder %s214, %s216
      %p223 = scmp.eq.s32.totalorder %s38, 1
      %p224 = por %p222, %p223
      %p225 = scmp.ne.s32.totalorder %s216, %s217
      %p226 = scmp.eq.s32.totalorder %s38, 0
      %p227 = por %p225, %p226
      %p228 = scmp.ne.s32.totalorder %s216, %s217
      %p229 = scmp.eq.s32.totalorder %s39, 1
      %p230 = por %p228, %p229
      %p232 = scmp.ne.s32.totalorder %s217, %s231
      %p233 = scmp.eq.s32.totalorder %s39, 0
      %p234 = por %p232, %p233
      %s236 = sadd.s32 %s235, 1
      %p239 = scmp.eq.s32.totalorder %s33, 1
      %p240 = scmp.ne.s32.totalorder %s235, %s237
      %p241 = scmp.eq.s32.totalorder %s33, 0
      %p242 = por %p240, %p241
      %p243 = scmp.ne.s32.totalorder %s235, %s237
      %p244 = scmp.eq.s32.totalorder %s38, 1
      %p245 = por %p243, %p244
      %p246 = scmp.ne.s32.totalorder %s237, %s238
      %p247 = scmp.eq.s32.totalorder %s38, 0
      %p248 = por %p246, %p247
      %p249 = scmp.ne.s32.totalorder %s237, %s238
      %p250 = scmp.eq.s32.totalorder %s39, 1
      %p251 = por %p249, %p250
      %p253 = scmp.ne.s32.totalorder %s238, %s252
      %p254 = scmp.eq.s32.totalorder %s39, 0
      %p255 = por %p253, %p254
      %s257 = sadd.s32 %s256, 1
      %p260 = scmp.eq.s32.totalorder %s33, 1
      %p261 = scmp.ne.s32.totalorder %s256, %s258
      %p262 = scmp.eq.s32.totalorder %s33, 0
      %p263 = por %p261, %p262
      %p264 = scmp.ne.s32.totalorder %s256, %s258
      %p265 = scmp.eq.s32.totalorder %s38, 1
      %p266 = por %p264, %p265
      %p267 = scmp.ne.s32.totalorder %s258, %s259
      %p268 = scmp.eq.s32.totalorder %s38, 0
      %p269 = por %p267, %p268
      %p270 = scmp.ne.s32.totalorder %s258, %s259
      %p271 = scmp.eq.s32.totalorder %s39, 1
      %p272 = por %p270, %p271
      %p274 = scmp.ne.s32.totalorder %s259, %s273
      %p275 = scmp.eq.s32.totalorder %s39, 0
      %p276 = por %p274, %p275
      %s278 = sadd.s32 %s277, 1
      %p281 = scmp.eq.s32.totalorder %s33, 1
      %p282 = scmp.ne.s32.totalorder %s277, %s279
      %p283 = scmp.eq.s32.totalorder %s33, 0
      %p284 = por %p282, %p283
      %p285 = scmp.ne.s32.totalorder %s277, %s279
      %p286 = scmp.eq.s32.totalorder %s38, 1
      %p287 = por %p285, %p286
      %p288 = scmp.ne.s32.totalorder %s279, %s280
      %p289 = scmp.eq.s32.totalorder %s38, 0
      %p290 = por %p288, %p289
      %p291 = scmp.ne.s32.totalorder %s279, %s280
      %p292 = scmp.eq.s32.totalorder %s39, 1
      %p293 = por %p291, %p292
      %p295 = scmp.ne.s32.totalorder %s280, %s294
      %p296 = scmp.eq.s32.totalorder %s39, 0
      %p297 = por %p295, %p296
      %s299 = sadd.s32 %s298, 1
      %p302 = scmp.eq.s32.totalorder %s33, 1
      %p303 = scmp.ne.s32.totalorder %s298, %s300
      %p304 = scmp.eq.s32.totalorder %s33, 0
      %p305 = por %p303, %p304
      %p306 = scmp.ne.s32.totalorder %s298, %s300
      %p307 = scmp.eq.s32.totalorder %s38, 1
      %p308 = por %p306, %p307
      %p309 = scmp.ne.s32.totalorder %s300, %s301
      %p310 = scmp.eq.s32.totalorder %s38, 0
      %p311 = por %p309, %p310
      %p312 = scmp.ne.s32.totalorder %s300, %s301
      %p313 = scmp.eq.s32.totalorder %s39, 1
      %p314 = por %p312, %p313
      %p316 = scmp.ne.s32.totalorder %s301, %s315
      %p317 = scmp.eq.s32.totalorder %s39, 0
      %p318 = por %p316, %p317
      %s320 = sadd.s32 %s319, 1
      %p323 = scmp.eq.s32.totalorder %s33, 1
      %p324 = scmp.ne.s32.totalorder %s319, %s321
      %p325 = scmp.eq.s32.totalorder %s33, 0
      %p326 = por %p324, %p325
      %p327 = scmp.ne.s32.totalorder %s319, %s321
      %p328 = scmp.eq.s32.totalorder %s38, 1
      %p329 = por %p327, %p328
      %p330 = scmp.ne.s32.totalorder %s321, %s322
      %p331 = scmp.eq.s32.totalorder %s38, 0
      %p332 = por %p330, %p331
      %p333 = scmp.ne.s32.totalorder %s321, %s322
      %p334 = scmp.eq.s32.totalorder %s39, 1
      %p335 = por %p333, %p334
      %p337 = scmp.ne.s32.totalorder %s322, %s336
      %p338 = scmp.eq.s32.totalorder %s39, 0
      %p339 = por %p337, %p338
      %s341 = sadd.s32 %s340, 1
      %p344 = scmp.eq.s32.totalorder %s33, 1
      %p345 = scmp.ne.s32.totalorder %s340, %s342
      %p346 = scmp.eq.s32.totalorder %s33, 0
      %p347 = por %p345, %p346
      %p348 = scmp.ne.s32.totalorder %s340, %s342
      %p349 = scmp.eq.s32.totalorder %s38, 1
      %p350 = por %p348, %p349
      %p351 = scmp.ne.s32.totalorder %s342, %s343
      %p352 = scmp.eq.s32.totalorder %s38, 0
      %p353 = por %p351, %p352
      %p354 = scmp.ne.s32.totalorder %s342, %s343
      %p355 = scmp.eq.s32.totalorder %s39, 1
      %p356 = por %p354, %p355
      %p358 = scmp.ne.s32.totalorder %s343, %s357
      %p359 = scmp.eq.s32.totalorder %s39, 0
      %p360 = por %p358, %p359
      %s362 = sadd.s32 %s361, 1
      %p365 = scmp.eq.s32.totalorder %s33, 1
      %p366 = scmp.ne.s32.totalorder %s361, %s363
      %p367 = scmp.eq.s32.totalorder %s33, 0
      %p368 = por %p366, %p367
      %p369 = scmp.ne.s32.totalorder %s361, %s363
      %p370 = scmp.eq.s32.totalorder %s38, 1
      %p371 = por %p369, %p370
      %p372 = scmp.ne.s32.totalorder %s363, %s364
      %p373 = scmp.eq.s32.totalorder %s38, 0
      %p374 = por %p372, %p373
      %p375 = scmp.ne.s32.totalorder %s363, %s364
      %p376 = scmp.eq.s32.totalorder %s39, 1
      %p377 = por %p375, %p376
      %p379 = scmp.ne.s32.totalorder %s364, %s378
      %p380 = scmp.eq.s32.totalorder %s39, 0
      %p381 = por %p379, %p380
      %s383 = sadd.s32 %s382, 1
      %p386 = scmp.eq.s32.totalorder %s33, 1
      %p387 = scmp.ne.s32.totalorder %s382, %s384
      %p388 = scmp.eq.s32.totalorder %s33, 0
      %p389 = por %p387, %p388
      %p390 = scmp.ne.s32.totalorder %s382, %s384
      %p391 = scmp.eq.s32.totalorder %s38, 1
      %p392 = por %p390, %p391
      %p393 = scmp.ne.s32.totalorder %s384, %s385
      %p394 = scmp.eq.s32.totalorder %s38, 0
      %p395 = por %p393, %p394
      %p396 = scmp.ne.s32.totalorder %s384, %s385
      %p397 = scmp.eq.s32.totalorder %s39, 1
      %p398 = por %p396, %p397
      %p400 = scmp.ne.s32.totalorder %s385, %s399
      %p401 = scmp.eq.s32.totalorder %s39, 0
      %p402 = por %p400, %p401
      %s404 = sadd.s32 %s403, 1
      %p407 = scmp.eq.s32.totalorder %s33, 1
      %p408 = scmp.ne.s32.totalorder %s403, %s405
      %p409 = scmp.eq.s32.totalorder %s33, 0
      %p410 = por %p408, %p409
      %p411 = scmp.ne.s32.totalorder %s403, %s405
      %p412 = scmp.eq.s32.totalorder %s38, 1
      %p413 = por %p411, %p412
      %p414 = scmp.ne.s32.totalorder %s405, %s406
      %p415 = scmp.eq.s32.totalorder %s38, 0
      %p416 = por %p414, %p415
      %p417 = scmp.ne.s32.totalorder %s405, %s406
      %p418 = scmp.eq.s32.totalorder %s39, 1
      %p419 = por %p417, %p418
      %p421 = scmp.ne.s32.totalorder %s406, %s420
      %p422 = scmp.eq.s32.totalorder %s39, 0
      %p423 = por %p421, %p422
      %s425 = sadd.s32 %s424, 1
      %p428 = scmp.eq.s32.totalorder %s33, 1
      %p429 = scmp.ne.s32.totalorder %s424, %s426
      %p430 = scmp.eq.s32.totalorder %s33, 0
      %p431 = por %p429, %p430
      %p432 = scmp.ne.s32.totalorder %s424, %s426
      %p433 = scmp.eq.s32.totalorder %s38, 1
      %p434 = por %p432, %p433
      %p435 = scmp.ne.s32.totalorder %s426, %s427
      %p436 = scmp.eq.s32.totalorder %s38, 0
      %p437 = por %p435, %p436
      %p438 = scmp.ne.s32.totalorder %s426, %s427
      %p439 = scmp.eq.s32.totalorder %s39, 1
      %p440 = por %p438, %p439
      %p442 = scmp.ne.s32.totalorder %s427, %s441
      %p443 = scmp.eq.s32.totalorder %s39, 0
      %p444 = por %p442, %p443
      %s445 = ssub.s32 %s33, %s40
      %p446 = scmp.eq.s32.totalorder %s445, 0
      %s448 = sadd.s32 %s447, 1
      %s449 = scalar_select %p446, %s447, %s448
      %p452 = pneg %p446
      %p453 = scmp.eq.s32.totalorder %s33, 1
      %p454 = por %p452, %p453
      %p455 = scmp.ne.s32.totalorder %s447, %s450
      %p456 = scmp.eq.s32.totalorder %s33, 0
      %p457 = por %p455, %p456
      %p458 = scmp.ne.s32.totalorder %s447, %s450
      %p459 = scmp.eq.s32.totalorder %s38, 1
      %p460 = por %p458, %p459
      %p461 = scmp.ne.s32.totalorder %s450, %s451
      %p462 = scmp.eq.s32.totalorder %s38, 0
      %p463 = por %p461, %p462
      %p464 = scmp.ne.s32.totalorder %s450, %s451
      %p465 = scmp.eq.s32.totalorder %s39, 1
      %p466 = por %p464, %p465
      %p468 = scmp.ne.s32.totalorder %s451, %s467
      %p469 = scmp.eq.s32.totalorder %s39, 0
      %p470 = por %p468, %p469
      %p471 = scmp.le.s32.totalorder 1, %s33
      %p472 = scmp.lt.s32.totalorder %s33, 3
      %p473 = pnand %p471, %p472
      %p474 = pneg %p473
      // Predicated region
      $region9: #{tpu_custom_call.1} parent=5 // pred_check
        _
      $region10: #{tpu_custom_call.1} parent=5 // pred_check_branch
        %476 = sbr.rel (%p473) target = $region12
      $region11: #{tpu_custom_call.1} parent=5 // pred_region
        %s477 = ssub.s32 %s33, 1
        // Predicated region
        $region13: #{tpu_custom_call.1} parent=11 // pred_check
          %p478 = pneg %p80
        $region14: #{tpu_custom_call.1} parent=11 // pred_check_branch
          %480 = sbr.rel (%p478) target = $region16
        $region15: #{tpu_custom_call.1} parent=11 // pred_region
          %s482 = ssub.s32 128, 128
          %483 = vsyncadd [#allocation3], %s482
          %s484 = sshll.u32 [#allocation2], 4
          %s485 = int_to_ptr.vmem [resolvable:$true] %s484
          %490 = dma.hbm_to_vmem [thread:$0]  %s1, 128, %s485, [#allocation3], 64, 64, 4
        $region16: #{tpu_custom_call.1} parent=11 // pred_fallthru
          _
        // Predicated region
        $region17: #{tpu_custom_call.1} parent=11 // pred_check
          %p491 = pneg %p101
        $region18: #{tpu_custom_call.1} parent=11 // pred_check_branch
          %493 = sbr.rel (%p491) target = $region20
        $region19: #{tpu_custom_call.1} parent=11 // pred_region
          %s495 = ssub.s32 16, 16
          %496 = vsyncadd [#allocation6], %s495
          %s498 = sshll.u32 [#allocation5], 4
          %s499 = int_to_ptr.vmem [resolvable:$true] %s498
          %501 = dma.hbm_to_vmem [thread:$0]  %s2, 16, %s499, [#allocation6]
        $region20: #{tpu_custom_call.1} parent=11 // pred_fallthru
          _
        // Predicated region
        $region21: #{tpu_custom_call.1} parent=11 // pred_check
          %p502 = pneg %p122
        $region22: #{tpu_custom_call.1} parent=11 // pred_check_branch
          %504 = sbr.rel (%p502) target = $region24
        $region23: #{tpu_custom_call.1} parent=11 // pred_region
          %s506 = ssub.s32 16, 16
          %507 = vsyncadd [#allocation6], %s506
          %s509 = sshll.u32 [#allocation7], 4
          %s510 = int_to_ptr.vmem [resolvable:$true] %s509
          %512 = dma.hbm_to_vmem [thread:$0]  %s3, 16, %s510, [#allocation6]
        $region24: #{tpu_custom_call.1} parent=11 // pred_fallthru
          _
        // Predicated region
        $region25: #{tpu_custom_call.1} parent=11 // pred_check
          %p513 = pneg %p143
        $region26: #{tpu_custom_call.1} parent=11 // pred_check_branch
          %515 = sbr.rel (%p513) target = $region28
        $region27: #{tpu_custom_call.1} parent=11 // pred_region
          %s517 = ssub.s32 16, 16
          %518 = vsyncadd [#allocation9], %s517
          %s520 = sshll.u32 [#allocation8], 4
          %s521 = int_to_ptr.vmem [resolvable:$true] %s520
          %523 = dma.hbm_to_vmem [thread:$0]  %s4, 16, %s521, [#allocation9]
        $region28: #{tpu_custom_call.1} parent=11 // pred_fallthru
          _
        // Predicated region
        $region29: #{tpu_custom_call.1} parent=11 // pred_check
          %p524 = pneg %p164
        $region30: #{tpu_custom_call.1} parent=11 // pred_check_branch
          %526 = sbr.rel (%p524) target = $region32
        $region31: #{tpu_custom_call.1} parent=11 // pred_region
          _
        $region32: #{tpu_custom_call.1} parent=11 // pred_fallthru
          _
        // Predicated region
        $region33: #{tpu_custom_call.1} parent=11 // pred_check
          %p527 = pneg %p185
        $region34: #{tpu_custom_call.1} parent=11 // pred_check_branch
          %529 = sbr.rel (%p527) target = $region36
        $region35: #{tpu_custom_call.1} parent=11 // pred_region
          %s531 = ssub.s32 32, 32
          %532 = vsyncadd [#allocation9], %s531
          %s534 = sshll.u32 [#allocation10], 4
          %s535 = int_to_ptr.vmem [resolvable:$true] %s534
          %537 = dma.hbm_to_vmem [thread:$0]  %s6, 32, %s535, [#allocation9]
        $region36: #{tpu_custom_call.1} parent=11 // pred_fallthru
          _
        // Predicated region
        $region37: #{tpu_custom_call.1} parent=11 // pred_check
          %p538 = pneg %p206
        $region38: #{tpu_custom_call.1} parent=11 // pred_check_branch
          %540 = sbr.rel (%p538) target = $region40
        $region39: #{tpu_custom_call.1} parent=11 // pred_region
          %s542 = ssub.s32 32, 32
          %543 = vsyncadd [#allocation12], %s542
          %s545 = sshll.u32 [#allocation11], 4
          %s546 = int_to_ptr.vmem [resolvable:$true] %s545
          %548 = dma.hbm_to_vmem [thread:$0]  %s7, 32, %s546, [#allocation12]
        $region40: #{tpu_custom_call.1} parent=11 // pred_fallthru
          _
        // Predicated region
        $region41: #{tpu_custom_call.1} parent=11 // pred_check
          %p549 = pneg %p227
        $region42: #{tpu_custom_call.1} parent=11 // pred_check_branch
          %551 = sbr.rel (%p549) target = $region44
        $region43: #{tpu_custom_call.1} parent=11 // pred_region
          %s553 = ssub.s32 32, 32
          %554 = vsyncadd [#allocation12], %s553
          %s556 = sshll.u32 [#allocation13], 4
          %s557 = int_to_ptr.vmem [resolvable:$true] %s556
          %559 = dma.hbm_to_vmem [thread:$0]  %s8, 32, %s557, [#allocation12]
        $region44: #{tpu_custom_call.1} parent=11 // pred_fallthru
          _
        // Predicated region
        $region45: #{tpu_custom_call.1} parent=11 // pred_check
          %p560 = pneg %p248
        $region46: #{tpu_custom_call.1} parent=11 // pred_check_branch
          %562 = sbr.rel (%p560) target = $region48
        $region47: #{tpu_custom_call.1} parent=11 // pred_region
          %s564 = ssub.s32 2048, 2048
          %565 = vsyncadd [#allocation15], %s564
          %s566 = sshll.u32 [#allocation14], 4
          %s567 = int_to_ptr.vmem [resolvable:$true] %s566
          %572 = dma.hbm_to_vmem [thread:$0]  %s9, 2048, %s567, [#allocation15], 64, 64, 4
        $region48: #{tpu_custom_call.1} parent=11 // pred_fallthru
          _
        // Predicated region
        $region49: #{tpu_custom_call.1} parent=11 // pred_check
          %p573 = pneg %p269
        $region50: #{tpu_custom_call.1} parent=11 // pred_check_branch
          %575 = sbr.rel (%p573) target = $region52
        $region51: #{tpu_custom_call.1} parent=11 // pred_region
          _
        $region52: #{tpu_custom_call.1} parent=11 // pred_fallthru
          _
        // Predicated region
        $region53: #{tpu_custom_call.1} parent=11 // pred_check
          %p576 = pneg %p290
        $region54: #{tpu_custom_call.1} parent=11 // pred_check_branch
          %578 = sbr.rel (%p576) target = $region56
        $region55: #{tpu_custom_call.1} parent=11 // pred_region
          _
        $region56: #{tpu_custom_call.1} parent=11 // pred_fallthru
          _
        // Predicated region
        $region57: #{tpu_custom_call.1} parent=11 // pred_check
          %p579 = pneg %p311
        $region58: #{tpu_custom_call.1} parent=11 // pred_check_branch
          %581 = sbr.rel (%p579) target = $region60
        $region59: #{tpu_custom_call.1} parent=11 // pred_region
          _
        $region60: #{tpu_custom_call.1} parent=11 // pred_fallthru
          _
        // Predicated region
        $region61: #{tpu_custom_call.1} parent=11 // pred_check
          %p582 = pneg %p332
        $region62: #{tpu_custom_call.1} parent=11 // pred_check_branch
          %584 = sbr.rel (%p582) target = $region64
        $region63: #{tpu_custom_call.1} parent=11 // pred_region
          _
        $region64: #{tpu_custom_call.1} parent=11 // pred_fallthru
          _
        // Predicated region
        $region65: #{tpu_custom_call.1} parent=11 // pred_check
          %p585 = pneg %p353
        $region66: #{tpu_custom_call.1} parent=11 // pred_check_branch
          %587 = sbr.rel (%p585) target = $region68
        $region67: #{tpu_custom_call.1} parent=11 // pred_region
          _
        $region68: #{tpu_custom_call.1} parent=11 // pred_fallthru
          _
        // Predicated region
        $region69: #{tpu_custom_call.1} parent=11 // pred_check
          %p588 = pneg %p374
        $region70: #{tpu_custom_call.1} parent=11 // pred_check_branch
          %590 = sbr.rel (%p588) target = $region72
        $region71: #{tpu_custom_call.1} parent=11 // pred_region
          _
        $region72: #{tpu_custom_call.1} parent=11 // pred_fallthru
          _
        // Predicated region
        $region73: #{tpu_custom_call.1} parent=11 // pred_check
          %p591 = pneg %p395
        $region74: #{tpu_custom_call.1} parent=11 // pred_check_branch
          %593 = sbr.rel (%p591) target = $region76
        $region75: #{tpu_custom_call.1} parent=11 // pred_region
          _
        $region76: #{tpu_custom_call.1} parent=11 // pred_fallthru
          _
        // Predicated region
        $region77: #{tpu_custom_call.1} parent=11 // pred_check
          %p594 = pneg %p416
        $region78: #{tpu_custom_call.1} parent=11 // pred_check_branch
          %596 = sbr.rel (%p594) target = $region80
        $region79: #{tpu_custom_call.1} parent=11 // pred_region
          %s598 = ssub.s32 512, 512
          %599 = vsyncadd [#allocation15], %s598
          %s600 = sshll.u32 [#allocation16], 4
          %s601 = int_to_ptr.vmem [resolvable:$true] %s600
          %606 = dma.hbm_to_vmem [thread:$0]  %s17, 512, %s601, [#allocation15], 64, 64, 4
        $region80: #{tpu_custom_call.1} parent=11 // pred_fallthru
          _
        // Predicated region
        $region81: #{tpu_custom_call.1} parent=11 // pred_check
          %p607 = pneg %p437
        $region82: #{tpu_custom_call.1} parent=11 // pred_check_branch
          %609 = sbr.rel (%p607) target = $region84
        $region83: #{tpu_custom_call.1} parent=11 // pred_region
          _
        $region84: #{tpu_custom_call.1} parent=11 // pred_fallthru
          _
      $region12: #{tpu_custom_call.1} parent=5 // pred_fallthru
        _
      %p610 = scmp.lt.s32.totalorder %s33, 2
      // Predicated region
      $region85: #{tpu_custom_call.1} parent=5 // pred_check
        %p611 = pneg %p610
      $region86: #{tpu_custom_call.1} parent=5 // pred_check_branch
        %613 = sbr.rel (%p611) target = $region88
      $region87: #{tpu_custom_call.1} parent=5 // pred_region
        // Predicated region
        $region89: #{tpu_custom_call.1} parent=87 // pred_check
          %p614 = pneg %p53
        $region90: #{tpu_custom_call.1} parent=87 // pred_check_branch
          %616 = sbr.rel (%p614) target = $region92
        $region91: #{tpu_custom_call.1} parent=87 // pred_region
          %s617 = smul.u32 2, %s33
          %p618 = scmp.lt.s32.totalorder %s617, 3
          %s619 = scalar_select %p618, %s617, 3
          %s620 = smul.addr %s619, 8
          %s621 = scalar_lea.vmem %s0, %s620
          %s622 = smul.u32 2, %s33
        $region92: #{tpu_custom_call.1} parent=87 // pred_fallthru
          _
      $region88: #{tpu_custom_call.1} parent=5 // pred_fallthru
        _
      %p623 = scmp.le.s32.totalorder 1, %s33
      %p624 = scmp.lt.s32.totalorder %s33, 3
      %p625 = pnand %p623, %p624
      %p626 = pneg %p625
      // Predicated region
      $region93: #{tpu_custom_call.1} parent=5 // pred_check
        _
      $region94: #{tpu_custom_call.1} parent=5 // pred_check_branch
        %628 = sbr.rel (%p625) target = $region96
      $region95: #{tpu_custom_call.1} parent=5 // pred_region
        %s629 = ssub.s32 %s33, 1
        // Predicated region
        $region97: #{tpu_custom_call.1} parent=95 // pred_check
          %p630 = pneg %p80
        $region98: #{tpu_custom_call.1} parent=95 // pred_check_branch
          %632 = sbr.rel (%p630) target = $region100
        $region99: #{tpu_custom_call.1} parent=95 // pred_region
          %633 = dma.done [#allocation3], 128
        $region100: #{tpu_custom_call.1} parent=95 // pred_fallthru
          _
        // Predicated region
        $region101: #{tpu_custom_call.1} parent=95 // pred_check
          %p634 = pneg %p101
        $region102: #{tpu_custom_call.1} parent=95 // pred_check_branch
          %636 = sbr.rel (%p634) target = $region104
        $region103: #{tpu_custom_call.1} parent=95 // pred_region
          %637 = dma.done [#allocation6], 16
        $region104: #{tpu_custom_call.1} parent=95 // pred_fallthru
          _
        // Predicated region
        $region105: #{tpu_custom_call.1} parent=95 // pred_check
          %p638 = pneg %p122
        $region106: #{tpu_custom_call.1} parent=95 // pred_check_branch
          %640 = sbr.rel (%p638) target = $region108
        $region107: #{tpu_custom_call.1} parent=95 // pred_region
          %641 = dma.done [#allocation6], 16
        $region108: #{tpu_custom_call.1} parent=95 // pred_fallthru
          _
        // Predicated region
        $region109: #{tpu_custom_call.1} parent=95 // pred_check
          %p642 = pneg %p143
        $region110: #{tpu_custom_call.1} parent=95 // pred_check_branch
          %644 = sbr.rel (%p642) target = $region112
        $region111: #{tpu_custom_call.1} parent=95 // pred_region
          %645 = dma.done [#allocation9], 16
        $region112: #{tpu_custom_call.1} parent=95 // pred_fallthru
          _
        // Predicated region
        $region113: #{tpu_custom_call.1} parent=95 // pred_check
          %p646 = pneg %p185
        $region114: #{tpu_custom_call.1} parent=95 // pred_check_branch
          %648 = sbr.rel (%p646) target = $region116
        $region115: #{tpu_custom_call.1} parent=95 // pred_region
          %649 = dma.done [#allocation9], 32
        $region116: #{tpu_custom_call.1} parent=95 // pred_fallthru
          _
        // Predicated region
        $region117: #{tpu_custom_call.1} parent=95 // pred_check
          %p650 = pneg %p206
        $region118: #{tpu_custom_call.1} parent=95 // pred_check_branch
          %652 = sbr.rel (%p650) target = $region120
        $region119: #{tpu_custom_call.1} parent=95 // pred_region
          %653 = dma.done [#allocation12], 32
        $region120: #{tpu_custom_call.1} parent=95 // pred_fallthru
          _
        // Predicated region
        $region121: #{tpu_custom_call.1} parent=95 // pred_check
          %p654 = pneg %p227
        $region122: #{tpu_custom_call.1} parent=95 // pred_check_branch
          %656 = sbr.rel (%p654) target = $region124
        $region123: #{tpu_custom_call.1} parent=95 // pred_region
          %657 = dma.done [#allocation12], 32
        $region124: #{tpu_custom_call.1} parent=95 // pred_fallthru
          _
        // Predicated region
        $region125: #{tpu_custom_call.1} parent=95 // pred_check
          %p658 = pneg %p248
        $region126: #{tpu_custom_call.1} parent=95 // pred_check_branch
          %660 = sbr.rel (%p658) target = $region128
        $region127: #{tpu_custom_call.1} parent=95 // pred_region
          %661 = dma.done [#allocation15], 2048
        $region128: #{tpu_custom_call.1} parent=95 // pred_fallthru
          _
        // Predicated region
        $region129: #{tpu_custom_call.1} parent=95 // pred_check
          %p662 = pneg %p416
        $region130: #{tpu_custom_call.1} parent=95 // pred_check_branch
          %664 = sbr.rel (%p662) target = $region132
        $region131: #{tpu_custom_call.1} parent=95 // pred_region
          %665 = dma.done [#allocation15], 512
        $region132: #{tpu_custom_call.1} parent=95 // pred_fallthru
          _
        %s666 = smul.u32 2, %s38
        %p667 = scmp.lt.s32.totalorder %s666, 3
        %s668 = scalar_select %p667, %s666, 3
        %s669 = smul.addr %s668, 8
        %s670 = scalar_lea.vmem %s0, %s669
        %p671 = pneg %p59
        %p672 = pneg %p56
        %p673 = pneg %p80
        %p674 = pneg %p77
        %p675 = pneg %p101
        %p676 = pneg %p98
        %p677 = pneg %p122
        %p678 = pneg %p119
        %p679 = pneg %p143
        %p680 = pneg %p140
        %p681 = pneg %p164
        %p682 = pneg %p161
        %p683 = pneg %p185
        %p684 = pneg %p182
        %p685 = pneg %p206
        %p686 = pneg %p203
        %p687 = pneg %p227
        %p688 = pneg %p224
        %p689 = pneg %p248
        %p690 = pneg %p245
        %p691 = pneg %p269
        %p692 = pneg %p266
        %p693 = pneg %p290
        %p694 = pneg %p287
        %p695 = pneg %p311
        %p696 = pneg %p308
        %p697 = pneg %p332
        %p698 = pneg %p329
        %p699 = pneg %p353
        %p700 = pneg %p350
        %p701 = pneg %p374
        %p702 = pneg %p371
        %p703 = pneg %p395
        %p704 = pneg %p392
        %p705 = pneg %p416
        %p706 = pneg %p413
        %p707 = pneg %p437
        %p708 = pneg %p434
        %p709 = pneg %p463
        %p710 = pneg %p460
        %s711 = sand.u32 %s450, 1
        %s712 = scalar_lea.sflag [#allocation4], %s711
        %s713 = sand.u32 %s450, 1
        %s714 = smul.addr %s713, 16
        %s715 = scalar_lea.vmem [#allocation17], %s714
        %s716 = smul.u32 2, %s38
        %p717 = scmp.lt.s32.totalorder %s716, 3
        %s718 = scalar_select %p717, %s716, 3
        %s719 = smul.addr %s718, 8
        %s720 = scalar_lea.vmem %s0, %s719
        %s721 = smul.u32 2, %s38
        %s722 = smul.u32 2, %s38
        %v724 = vld [vmem:[%s720] sm:$0xff]
        %v725 = vld [vmem:[%s720 + $0x8] sm:$0xff]
        %v726 = vpack.c.bf16 %v725, %v724
        %v727 = vld [vmem:[#allocation2] sm:$0xf]
        %v728 = vld [vmem:[#allocation2 + $0x4] sm:$0xf]
        %v729 = vld [vmem:[#allocation5] sm:$0x1]
        %v730 = vld [vmem:[#allocation7] sm:$0x1]
        %v731 = vld [vmem:[#allocation8] sm:$0x1]
        %v733 = vlaneseq
        %v734 = vshrl.u32 %v733, 7
        %v735 = vsub.s32 0, %v734
        %v736 = vrot.slane %v729, %v735
        %v740 = vunpack.c.l.b16 %v727
        %v741 = vunpack.c.l.b16 %v728
        %v742 = vpack.c.b16 %v741, %v740
        %vm744 = vcmask 130048
        %v746 = vsel %vm744, %v726, 0
        %748 = vmatprep.subr.bf16.mxu0 0
        %749 = vmatpush1.bf16.msra.mxu0 0
        %750 = vmatprep.subr.bf16.mxu0 0
        %751 = vmatpush1.bf16.msra.mxu0 0
        %752 = vmatprep.subr.bf16.mxu0 0
        %753 = vmatpush1.bf16.msra.mxu0 0
        %754 = vmatprep.subr.bf16.mxu0 0
        %755 = vmatpush1.bf16.msra.mxu0 0
        %756 = vmatprep.subr.bf16.mxu0 0
        %757 = vmatpush1.bf16.msra.mxu0 0
        %758 = vmatprep.subr.bf16.mxu0 0
        %759 = vmatpush1.bf16.msra.mxu0 0
        %760 = vmatprep.subr.bf16.mxu0 0
        %761 = vmatpush1.bf16.msra.mxu0 0
        %762 = vmatprep.subr.bf16.mxu0 0
        %763 = vmatpush1.bf16.msra.mxu0 %v742
        %764 = vmatprep.subr.bf16.mxu0 0
        %765 = vmatpush2.bf16.msra.mxu0 0
        %766 = vmatprep.subr.bf16.mxu0 0
        %767 = vmatpush2.bf16.msra.mxu0 0
        %768 = vmatprep.subr.bf16.mxu0 0
        %769 = vmatpush2.bf16.msra.mxu0 0
        %770 = vmatprep.subr.bf16.mxu0 0
        %771 = vmatpush2.bf16.msra.mxu0 0
        %772 = vmatprep.subr.bf16.mxu0 0
        %773 = vmatpush2.bf16.msra.mxu0 0
        %774 = vmatprep.subr.bf16.mxu0 0
        %775 = vmatpush2.bf16.msra.mxu0 0
        %776 = vmatprep.subr.bf16.mxu0 0
        %777 = vmatpush2.bf16.msra.mxu0 0
        %778 = vmatprep.subr.bf16.mxu0 0
        %779 = vmatpush2.bf16.msra.mxu0 0
        %780 = vmatprep.mubr.bf16.mxu0 0
        %781 = vmatmul.mubr.bf16.gmra.mxu0 %v746
        %v782 = vpop.f32.mrf.mxu0
        %v783 = vadd.f32 %v736, %v782
        %v784 = vpop.f32.mrf.mxu0
        %v785 = vpop.f32.mrf.mxu0
        %v786 = vadd.f32 %v736, %v785
        %v787 = vpop.f32.mrf.mxu0
        %788 = vdwg.mxu0
        %789 = vadd.xlane.f32.xlu0 %v783
        %v790 = vpop.xlane.xlu0 %789
        %791 = vadd.xlane.f32.xlu0 %v786
        %v792 = vpop.xlane.xlu0 %791
        %v793 = vrcp.pop 128.0
        %v794 = vmul.f32 %v790, %v793
        %v795 = vmul.f32 %v792, %v793
        %v796 = vsub.f32 %v783, %v794
        %v797 = vsub.f32 %v786, %v795
        %v798 = vmul.f32 %v796, %v796
        %v799 = vmul.f32 %v797, %v797
        %800 = vadd.xlane.f32.xlu0 %v798
        %v801 = vpop.xlane.xlu0 %800
        %802 = vadd.xlane.f32.xlu0 %v799
        %v803 = vpop.xlane.xlu0 %802
        %v804 = vmul.f32 %v801, %v793
        %v805 = vmul.f32 %v803, %v793
        %v806 = vadd.f32 %v804, 1e-05
        %v807 = vadd.f32 %v805, 1e-05
        %v808 = vrsqrt.pop %v806
        %v809 = vrsqrt.pop %v807
        %v810 = vmul.f32 %v796, %v808
        %v811 = vmul.f32 %v797, %v809
        %v813 = vlaneseq
        %v814 = vshrl.u32 %v813, 7
        %v815 = vsub.s32 0, %v814
        %v816 = vrot.slane %v730, %v815
        %v818 = vmul.f32 %v810, %v816
        %v819 = vmul.f32 %v811, %v816
        %v821 = vlaneseq
        %v822 = vshrl.u32 %v821, 7
        %v823 = vsub.s32 0, %v822
        %v824 = vrot.slane %v731, %v823
        %v826 = vadd.f32 %v818, %v824
        %v827 = vadd.f32 %v819, %v824
        %v828 = vmax.f32 %v826, 0.0
        %v829 = vmax.f32 %v827, 0.0
        %v830 = vpack.c.bf16 %v829, %v828
        %v831 = vld [vmem:[%s5] sm:$0xff]
        %v832 = vld [vmem:[%s5 + $0x8] sm:$0xff]
        %v833 = vld [vmem:[%s5 + $0x10] sm:$0xff]
        %v834 = vld [vmem:[%s5 + $0x18] sm:$0xff]
        %v835 = vld [vmem:[%s5 + $0x20] sm:$0xff]
        %v836 = vld [vmem:[%s5 + $0x28] sm:$0xff]
        %v837 = vld [vmem:[%s5 + $0x30] sm:$0xff]
        %v838 = vld [vmem:[%s5 + $0x38] sm:$0xff]
        %v839 = vld [vmem:[%s5 + $0x40] sm:$0xff]
        %v840 = vld [vmem:[%s5 + $0x48] sm:$0xff]
        %v841 = vld [vmem:[%s5 + $0x50] sm:$0xff]
        %v842 = vld [vmem:[%s5 + $0x58] sm:$0xff]
        %v843 = vld [vmem:[%s5 + $0x60] sm:$0xff]
        %v844 = vld [vmem:[%s5 + $0x68] sm:$0xff]
        %v845 = vld [vmem:[%s5 + $0x70] sm:$0xff]
        %v846 = vld [vmem:[%s5 + $0x78] sm:$0xff]
        %v847 = vld [vmem:[#allocation10] sm:$0x3]
        %v848 = vld [vmem:[#allocation11] sm:$0x3]
        %v849 = vld [vmem:[#allocation13] sm:$0x3]
        %v851 = vlaneseq
        %v852 = vshrl.u32 %v851, 7
        %v853 = vsub.s32 0, %v852
        %v854 = vrot.slane %v847, %v853
        %v855 = vlaneseq
        %v856 = vshrl.u32 %v855, 7
        %v857 = vsub.s32 1, %v856
        %v858 = vrot.slane %v847, %v857
        %v877 = vunpack.c.l.b16 %v831
        %v878 = vunpack.c.h.b16 %v831
        %v879 = vunpack.c.l.b16 %v832
        %v880 = vunpack.c.h.b16 %v832
        %v881 = vunpack.c.l.b16 %v833
        %v882 = vunpack.c.h.b16 %v833
        %v883 = vunpack.c.l.b16 %v834
        %v884 = vunpack.c.h.b16 %v834
        %v885 = vunpack.c.l.b16 %v835
        %v886 = vunpack.c.h.b16 %v835
        %v887 = vunpack.c.l.b16 %v836
        %v888 = vunpack.c.h.b16 %v836
        %v889 = vunpack.c.l.b16 %v837
        %v890 = vunpack.c.h.b16 %v837
        %v891 = vunpack.c.l.b16 %v838
        %v892 = vunpack.c.h.b16 %v838
        %v893 = vunpack.c.l.b16 %v839
        %v894 = vunpack.c.h.b16 %v839
        %v895 = vunpack.c.l.b16 %v840
        %v896 = vunpack.c.h.b16 %v840
        %v897 = vunpack.c.l.b16 %v841
        %v898 = vunpack.c.h.b16 %v841
        %v899 = vunpack.c.l.b16 %v842
        %v900 = vunpack.c.h.b16 %v842
        %v901 = vunpack.c.l.b16 %v843
        %v902 = vunpack.c.h.b16 %v843
        %v903 = vunpack.c.l.b16 %v844
        %v904 = vunpack.c.h.b16 %v844
        %v905 = vunpack.c.l.b16 %v845
        %v906 = vunpack.c.h.b16 %v845
        %v907 = vunpack.c.l.b16 %v846
        %v908 = vunpack.c.h.b16 %v846
        %v909 = vpack.c.b16 %v879, %v877
        %v910 = vpack.c.b16 %v880, %v878
        %v911 = vpack.c.b16 %v883, %v881
        %v912 = vpack.c.b16 %v884, %v882
        %v913 = vpack.c.b16 %v887, %v885
        %v914 = vpack.c.b16 %v888, %v886
        %v915 = vpack.c.b16 %v891, %v889
        %v916 = vpack.c.b16 %v892, %v890
        %v917 = vpack.c.b16 %v895, %v893
        %v918 = vpack.c.b16 %v896, %v894
        %v919 = vpack.c.b16 %v899, %v897
        %v920 = vpack.c.b16 %v900, %v898
        %v921 = vpack.c.b16 %v903, %v901
        %v922 = vpack.c.b16 %v904, %v902
        %v923 = vpack.c.b16 %v907, %v905
        %v924 = vpack.c.b16 %v908, %v906
        %941 = vmatprep.subr.bf16.mxu0 %v924
        %942 = vmatpush1.bf16.msra.mxu0 %v923
        %943 = vmatprep.subr.bf16.mxu0 %v922
        %944 = vmatpush1.bf16.msra.mxu0 %v921
        %945 = vmatprep.subr.bf16.mxu0 %v920
        %946 = vmatpush1.bf16.msra.mxu0 %v919
        %947 = vmatprep.subr.bf16.mxu0 %v918
        %948 = vmatpush1.bf16.msra.mxu0 %v917
        %949 = vmatprep.subr.bf16.mxu0 %v916
        %950 = vmatpush1.bf16.msra.mxu0 %v915
        %951 = vmatprep.subr.bf16.mxu0 %v914
        %952 = vmatpush1.bf16.msra.mxu0 %v913
        %953 = vmatprep.subr.bf16.mxu0 %v912
        %954 = vmatpush1.bf16.msra.mxu0 %v911
        %955 = vmatprep.subr.bf16.mxu0 %v910
        %956 = vmatpush1.bf16.msra.mxu0 %v909
        %957 = vmatprep.subr.bf16.mxu0 0
        %958 = vmatpush2.bf16.msra.mxu0 0
        %959 = vmatprep.subr.bf16.mxu0 0
        %960 = vmatpush2.bf16.msra.mxu0 0
        %961 = vmatprep.subr.bf16.mxu0 0
        %962 = vmatpush2.bf16.msra.mxu0 0
        %963 = vmatprep.subr.bf16.mxu0 0
        %964 = vmatpush2.bf16.msra.mxu0 0
        %965 = vmatprep.subr.bf16.mxu0 0
        %966 = vmatpush2.bf16.msra.mxu0 0
        %967 = vmatprep.subr.bf16.mxu0 0
        %968 = vmatpush2.bf16.msra.mxu0 0
        %969 = vmatprep.subr.bf16.mxu0 0
        %970 = vmatpush2.bf16.msra.mxu0 0
        %971 = vmatprep.subr.bf16.mxu0 0
        %972 = vmatpush2.bf16.msra.mxu0 0
        %973 = vmatprep.mubr.bf16.mxu0 0
        %974 = vmatmul.mubr.bf16.gmra.mxu0 %v830
        %v975 = vpop.f32.mrf.mxu0
        %v976 = vadd.f32 %v854, %v975
        %v977 = vpop.f32.mrf.mxu0
        %v978 = vadd.f32 %v858, %v977
        %v979 = vpop.f32.mrf.mxu0
        %v980 = vadd.f32 %v854, %v979
        %v981 = vpop.f32.mrf.mxu0
        %v982 = vadd.f32 %v858, %v981
        %983 = vdwg.mxu0
        %v984 = vadd.f32 %v976, %v978
        %985 = vadd.xlane.f32.xlu0 %v984
        %v986 = vpop.xlane.xlu0 %985
        %v987 = vadd.f32 %v980, %v982
        %988 = vadd.xlane.f32.xlu0 %v987
        %v989 = vpop.xlane.xlu0 %988
        %v990 = vrcp.pop 256.0
        %v991 = vmul.f32 %v986, %v990
        %v992 = vmul.f32 %v989, %v990
        %v993 = vsub.f32 %v976, %v991
        %v994 = vsub.f32 %v978, %v991
        %v995 = vsub.f32 %v980, %v992
        %v996 = vsub.f32 %v982, %v992
        %v997 = vmul.f32 %v993, %v993
        %v998 = vmul.f32 %v994, %v994
        %v999 = vmul.f32 %v995, %v995
        %v1000 = vmul.f32 %v996, %v996
        %v1001 = vadd.f32 %v997, %v998
        %1002 = vadd.xlane.f32.xlu0 %v1001
        %v1003 = vpop.xlane.xlu0 %1002
        %v1004 = vadd.f32 %v999, %v1000
        %1005 = vadd.xlane.f32.xlu0 %v1004
        %v1006 = vpop.xlane.xlu0 %1005
        %v1007 = vmul.f32 %v1003, %v990
        %v1008 = vmul.f32 %v1006, %v990
        %v1009 = vadd.f32 %v1007, 1e-05
        %v1010 = vadd.f32 %v1008, 1e-05
        %v1011 = vrsqrt.pop %v1009
        %v1012 = vrsqrt.pop %v1010
        %v1013 = vmul.f32 %v993, %v1011
        %v1014 = vmul.f32 %v994, %v1011
        %v1015 = vmul.f32 %v995, %v1012
        %v1016 = vmul.f32 %v996, %v1012
        %v1018 = vlaneseq
        %v1019 = vshrl.u32 %v1018, 7
        %v1020 = vsub.s32 0, %v1019
        %v1021 = vrot.slane %v848, %v1020
        %v1022 = vlaneseq
        %v1023 = vshrl.u32 %v1022, 7
        %v1024 = vsub.s32 1, %v1023
        %v1025 = vrot.slane %v848, %v1024
        %v1028 = vmul.f32 %v1013, %v1021
        %v1029 = vmul.f32 %v1014, %v1025
        %v1030 = vmul.f32 %v1015, %v1021
        %v1031 = vmul.f32 %v1016, %v1025
        %v1033 = vlaneseq
        %v1034 = vshrl.u32 %v1033, 7
        %v1035 = vsub.s32 0, %v1034
        %v1036 = vrot.slane %v849, %v1035
        %v1037 = vlaneseq
        %v1038 = vshrl.u32 %v1037, 7
        %v1039 = vsub.s32 1, %v1038
        %v1040 = vrot.slane %v849, %v1039
        %v1043 = vadd.f32 %v1028, %v1036
        %v1044 = vadd.f32 %v1029, %v1040
        %v1045 = vadd.f32 %v1030, %v1036
        %v1046 = vadd.f32 %v1031, %v1040
        %v1047 = vmax.f32 %v1043, 0.0
        %v1048 = vmax.f32 %v1044, 0.0
        %v1049 = vmax.f32 %v1045, 0.0
        %v1050 = vmax.f32 %v1046, 0.0
        %v1051 = vpack.c.bf16 %v1049, %v1047
        %v1052 = vpack.c.bf16 %v1050, %v1048
        %v1053 = vld [vmem:[#allocation14] sm:$0xf]
        %v1054 = vld [vmem:[#allocation14 + $0x4] sm:$0xf]
        %v1055 = vld [vmem:[#allocation14 + $0x8] sm:$0xf]
        %v1056 = vld [vmem:[#allocation14 + $0xc] sm:$0xf]
        %v1057 = vld [vmem:[#allocation14 + $0x10] sm:$0xf]
        %v1058 = vld [vmem:[#allocation14 + $0x14] sm:$0xf]
        %v1059 = vld [vmem:[#allocation14 + $0x18] sm:$0xf]
        %v1060 = vld [vmem:[#allocation14 + $0x1c] sm:$0xf]
        %v1061 = vld [vmem:[#allocation14 + $0x20] sm:$0xf]
        %v1062 = vld [vmem:[#allocation14 + $0x24] sm:$0xf]
        %v1063 = vld [vmem:[#allocation14 + $0x28] sm:$0xf]
        %v1064 = vld [vmem:[#allocation14 + $0x2c] sm:$0xf]
        %v1065 = vld [vmem:[#allocation14 + $0x30] sm:$0xf]
        %v1066 = vld [vmem:[#allocation14 + $0x34] sm:$0xf]
        %v1067 = vld [vmem:[#allocation14 + $0x38] sm:$0xf]
        %v1068 = vld [vmem:[#allocation14 + $0x3c] sm:$0xf]
        %v1069 = vld [vmem:[#allocation14 + $0x40] sm:$0xf]
        %v1070 = vld [vmem:[#allocation14 + $0x44] sm:$0xf]
        %v1071 = vld [vmem:[#allocation14 + $0x48] sm:$0xf]
        %v1072 = vld [vmem:[#allocation14 + $0x4c] sm:$0xf]
        %v1073 = vld [vmem:[#allocation14 + $0x50] sm:$0xf]
        %v1074 = vld [vmem:[#allocation14 + $0x54] sm:$0xf]
        %v1075 = vld [vmem:[#allocation14 + $0x58] sm:$0xf]
        %v1076 = vld [vmem:[#allocation14 + $0x5c] sm:$0xf]
        %v1077 = vld [vmem:[#allocation14 + $0x60] sm:$0xf]
        %v1078 = vld [vmem:[#allocation14 + $0x64] sm:$0xf]
        %v1079 = vld [vmem:[#allocation14 + $0x68] sm:$0xf]
        %v1080 = vld [vmem:[#allocation14 + $0x6c] sm:$0xf]
        %v1081 = vld [vmem:[#allocation14 + $0x70] sm:$0xf]
        %v1082 = vld [vmem:[#allocation14 + $0x74] sm:$0xf]
        %v1083 = vld [vmem:[#allocation14 + $0x78] sm:$0xf]
        %v1084 = vld [vmem:[#allocation14 + $0x7c] sm:$0xf]
        %v1085 = vld [vmem:[%s10] sm:$0x1]
        %v1086 = vld [vmem:[%s11] sm:$0x1]
        %v1087 = vld [vmem:[%s12] sm:$0x1]
        %v1089 = vlaneseq
        %v1090 = vshrl.u32 %v1089, 7
        %v1091 = vsub.s32 0, %v1090
        %v1092 = vrot.slane %v1085, %v1091
        %v1126 = vunpack.c.l.b16 %v1053
        %v1127 = vunpack.c.l.b16 %v1054
        %v1128 = vunpack.c.l.b16 %v1055
        %v1129 = vunpack.c.l.b16 %v1056
        %v1130 = vunpack.c.l.b16 %v1057
        %v1131 = vunpack.c.l.b16 %v1058
        %v1132 = vunpack.c.l.b16 %v1059
        %v1133 = vunpack.c.l.b16 %v1060
        %v1134 = vunpack.c.l.b16 %v1061
        %v1135 = vunpack.c.l.b16 %v1062
        %v1136 = vunpack.c.l.b16 %v1063
        %v1137 = vunpack.c.l.b16 %v1064
        %v1138 = vunpack.c.l.b16 %v1065
        %v1139 = vunpack.c.l.b16 %v1066
        %v1140 = vunpack.c.l.b16 %v1067
        %v1141 = vunpack.c.l.b16 %v1068
        %v1142 = vunpack.c.l.b16 %v1069
        %v1143 = vunpack.c.l.b16 %v1070
        %v1144 = vunpack.c.l.b16 %v1071
        %v1145 = vunpack.c.l.b16 %v1072
        %v1146 = vunpack.c.l.b16 %v1073
        %v1147 = vunpack.c.l.b16 %v1074
        %v1148 = vunpack.c.l.b16 %v1075
        %v1149 = vunpack.c.l.b16 %v1076
        %v1150 = vunpack.c.l.b16 %v1077
        %v1151 = vunpack.c.l.b16 %v1078
        %v1152 = vunpack.c.l.b16 %v1079
        %v1153 = vunpack.c.l.b16 %v1080
        %v1154 = vunpack.c.l.b16 %v1081
        %v1155 = vunpack.c.l.b16 %v1082
        %v1156 = vunpack.c.l.b16 %v1083
        %v1157 = vunpack.c.l.b16 %v1084
        %v1158 = vpack.c.b16 %v1127, %v1126
        %v1159 = vpack.c.b16 %v1129, %v1128
        %v1160 = vpack.c.b16 %v1131, %v1130
        %v1161 = vpack.c.b16 %v1133, %v1132
        %v1162 = vpack.c.b16 %v1135, %v1134
        %v1163 = vpack.c.b16 %v1137, %v1136
        %v1164 = vpack.c.b16 %v1139, %v1138
        %v1165 = vpack.c.b16 %v1141, %v1140
        %v1166 = vpack.c.b16 %v1143, %v1142
        %v1167 = vpack.c.b16 %v1145, %v1144
        %v1168 = vpack.c.b16 %v1147, %v1146
        %v1169 = vpack.c.b16 %v1149, %v1148
        %v1170 = vpack.c.b16 %v1151, %v1150
        %v1171 = vpack.c.b16 %v1153, %v1152
        %v1172 = vpack.c.b16 %v1155, %v1154
        %v1173 = vpack.c.b16 %v1157, %v1156
        %1190 = vmatprep.subr.bf16.mxu0 0
        %1191 = vmatpush1.bf16.msra.mxu0 %v1165
        %1192 = vmatprep.subr.bf16.mxu0 0
        %1193 = vmatpush1.bf16.msra.mxu0 %v1164
        %1194 = vmatprep.subr.bf16.mxu0 0
        %1195 = vmatpush1.bf16.msra.mxu0 %v1163
        %1196 = vmatprep.subr.bf16.mxu0 0
        %1197 = vmatpush1.bf16.msra.mxu0 %v1162
        %1198 = vmatprep.subr.bf16.mxu0 0
        %1199 = vmatpush1.bf16.msra.mxu0 %v1161
        %1200 = vmatprep.subr.bf16.mxu0 0
        %1201 = vmatpush1.bf16.msra.mxu0 %v1160
        %1202 = vmatprep.subr.bf16.mxu0 0
        %1203 = vmatpush1.bf16.msra.mxu0 %v1159
        %1204 = vmatprep.subr.bf16.mxu0 0
        %1205 = vmatpush1.bf16.msra.mxu0 %v1158
        %1206 = vmatprep.subr.bf16.mxu0 0
        %1207 = vmatpush2.bf16.msra.mxu0 %v1173
        %1208 = vmatprep.subr.bf16.mxu0 0
        %1209 = vmatpush2.bf16.msra.mxu0 %v1172
        %1210 = vmatprep.subr.bf16.mxu0 0
        %1211 = vmatpush2.bf16.msra.mxu0 %v1171
        %1212 = vmatprep.subr.bf16.mxu0 0
        %1213 = vmatpush2.bf16.msra.mxu0 %v1170
        %1214 = vmatprep.subr.bf16.mxu0 0
        %1215 = vmatpush2.bf16.msra.mxu0 %v1169
        %1216 = vmatprep.subr.bf16.mxu0 0
        %1217 = vmatpush2.bf16.msra.mxu0 %v1168
        %1218 = vmatprep.subr.bf16.mxu0 0
        %1219 = vmatpush2.bf16.msra.mxu0 %v1167
        %1220 = vmatprep.subr.bf16.mxu0 0
        %1221 = vmatpush2.bf16.msra.mxu0 %v1166
        %1222 = vmatprep.mubr.bf16.mxu0 %v1052
        %1223 = vmatmul.mubr.bf16.gmra.mxu0 %v1051
        %v1224 = vpop.f32.mrf.mxu0
        %v1225 = vadd.f32 %v1092, %v1224
        %v1226 = vpop.f32.mrf.mxu0
        %v1227 = vpop.f32.mrf.mxu0
        %v1228 = vadd.f32 %v1092, %v1227
        %v1229 = vpop.f32.mrf.mxu0
        %1230 = vdwg.mxu0
        %1231 = vadd.xlane.f32.xlu0 %v1225
        %v1232 = vpop.xlane.xlu0 %1231
        %1233 = vadd.xlane.f32.xlu0 %v1228
        %v1234 = vpop.xlane.xlu0 %1233
        %v1235 = vmul.f32 %v1232, %v793
        %v1236 = vmul.f32 %v1234, %v793
        %v1237 = vsub.f32 %v1225, %v1235
        %v1238 = vsub.f32 %v1228, %v1236
        %v1239 = vmul.f32 %v1237, %v1237
        %v1240 = vmul.f32 %v1238, %v1238
        %1241 = vadd.xlane.f32.xlu0 %v1239
        %v1242 = vpop.xlane.xlu0 %1241
        %1243 = vadd.xlane.f32.xlu0 %v1240
        %v1244 = vpop.xlane.xlu0 %1243
        %v1245 = vmul.f32 %v1242, %v793
        %v1246 = vmul.f32 %v1244, %v793
        %v1247 = vadd.f32 %v1245, 1e-05
        %v1248 = vadd.f32 %v1246, 1e-05
        %v1249 = vrsqrt.pop %v1247
        %v1250 = vrsqrt.pop %v1248
        %v1251 = vmul.f32 %v1237, %v1249
        %v1252 = vmul.f32 %v1238, %v1250
        %v1254 = vlaneseq
        %v1255 = vshrl.u32 %v1254, 7
        %v1256 = vsub.s32 0, %v1255
        %v1257 = vrot.slane %v1086, %v1256
        %v1259 = vmul.f32 %v1251, %v1257
        %v1260 = vmul.f32 %v1252, %v1257
        %v1262 = vlaneseq
        %v1263 = vshrl.u32 %v1262, 7
        %v1264 = vsub.s32 0, %v1263
        %v1265 = vrot.slane %v1087, %v1264
        %v1267 = vadd.f32 %v1259, %v1265
        %v1268 = vadd.f32 %v1260, %v1265
        %v1269 = vmax.f32 %v1267, 0.0
        %v1270 = vmax.f32 %v1268, 0.0
        %v1271 = vpack.c.bf16 %v1270, %v1269
        %v1272 = vld [vmem:[%s13] sm:$0xf]
        %v1273 = vld [vmem:[%s13 + $0x4] sm:$0xf]
        %v1274 = vld [vmem:[%s13 + $0x8] sm:$0xf]
        %v1275 = vld [vmem:[%s13 + $0xc] sm:$0xf]
        %v1276 = vld [vmem:[%s13 + $0x10] sm:$0xf]
        %v1277 = vld [vmem:[%s13 + $0x14] sm:$0xf]
        %v1278 = vld [vmem:[%s13 + $0x18] sm:$0xf]
        %v1279 = vld [vmem:[%s13 + $0x1c] sm:$0xf]
        %v1280 = vld [vmem:[%s13 + $0x20] sm:$0xf]
        %v1281 = vld [vmem:[%s13 + $0x24] sm:$0xf]
        %v1282 = vld [vmem:[%s13 + $0x28] sm:$0xf]
        %v1283 = vld [vmem:[%s13 + $0x2c] sm:$0xf]
        %v1284 = vld [vmem:[%s13 + $0x30] sm:$0xf]
        %v1285 = vld [vmem:[%s13 + $0x34] sm:$0xf]
        %v1286 = vld [vmem:[%s13 + $0x38] sm:$0xf]
        %v1287 = vld [vmem:[%s13 + $0x3c] sm:$0xf]
        %v1288 = vld [vmem:[%s14] sm:$0x1]
        %v1289 = vld [vmem:[%s15] sm:$0x1]
        %v1290 = vld [vmem:[%s16] sm:$0x1]
        %v1292 = vlaneseq
        %v1293 = vshrl.u32 %v1292, 7
        %v1294 = vsub.s32 0, %v1293
        %v1295 = vrot.slane %v1288, %v1294
        %v1313 = vunpack.c.l.b16 %v1272
        %v1314 = vunpack.c.l.b16 %v1273
        %v1315 = vunpack.c.l.b16 %v1274
        %v1316 = vunpack.c.l.b16 %v1275
        %v1317 = vunpack.c.l.b16 %v1276
        %v1318 = vunpack.c.l.b16 %v1277
        %v1319 = vunpack.c.l.b16 %v1278
        %v1320 = vunpack.c.l.b16 %v1279
        %v1321 = vunpack.c.l.b16 %v1280
        %v1322 = vunpack.c.l.b16 %v1281
        %v1323 = vunpack.c.l.b16 %v1282
        %v1324 = vunpack.c.l.b16 %v1283
        %v1325 = vunpack.c.l.b16 %v1284
        %v1326 = vunpack.c.l.b16 %v1285
        %v1327 = vunpack.c.l.b16 %v1286
        %v1328 = vunpack.c.l.b16 %v1287
        %v1329 = vpack.c.b16 %v1314, %v1313
        %v1330 = vpack.c.b16 %v1316, %v1315
        %v1331 = vpack.c.b16 %v1318, %v1317
        %v1332 = vpack.c.b16 %v1320, %v1319
        %v1333 = vpack.c.b16 %v1322, %v1321
        %v1334 = vpack.c.b16 %v1324, %v1323
        %v1335 = vpack.c.b16 %v1326, %v1325
        %v1336 = vpack.c.b16 %v1328, %v1327
        %1345 = vmatprep.subr.bf16.mxu0 0
        %1346 = vmatpush1.bf16.msra.mxu0 %v1336
        %1347 = vmatprep.subr.bf16.mxu0 0
        %1348 = vmatpush1.bf16.msra.mxu0 %v1335
        %1349 = vmatprep.subr.bf16.mxu0 0
        %1350 = vmatpush1.bf16.msra.mxu0 %v1334
        %1351 = vmatprep.subr.bf16.mxu0 0
        %1352 = vmatpush1.bf16.msra.mxu0 %v1333
        %1353 = vmatprep.subr.bf16.mxu0 0
        %1354 = vmatpush1.bf16.msra.mxu0 %v1332
        %1355 = vmatprep.subr.bf16.mxu0 0
        %1356 = vmatpush1.bf16.msra.mxu0 %v1331
        %1357 = vmatprep.subr.bf16.mxu0 0
        %1358 = vmatpush1.bf16.msra.mxu0 %v1330
        %1359 = vmatprep.subr.bf16.mxu0 0
        %1360 = vmatpush1.bf16.msra.mxu0 %v1329
        %1361 = vmatprep.subr.bf16.mxu0 0
        %1362 = vmatpush2.bf16.msra.mxu0 0
        %1363 = vmatprep.subr.bf16.mxu0 0
        %1364 = vmatpush2.bf16.msra.mxu0 0
        %1365 = vmatprep.subr.bf16.mxu0 0
        %1366 = vmatpush2.bf16.msra.mxu0 0
        %1367 = vmatprep.subr.bf16.mxu0 0
        %1368 = vmatpush2.bf16.msra.mxu0 0
        %1369 = vmatprep.subr.bf16.mxu0 0
        %1370 = vmatpush2.bf16.msra.mxu0 0
        %1371 = vmatprep.subr.bf16.mxu0 0
        %1372 = vmatpush2.bf16.msra.mxu0 0
        %1373 = vmatprep.subr.bf16.mxu0 0
        %1374 = vmatpush2.bf16.msra.mxu0 0
        %1375 = vmatprep.subr.bf16.mxu0 0
        %1376 = vmatpush2.bf16.msra.mxu0 0
        %1377 = vmatprep.mubr.bf16.mxu0 0
        %1378 = vmatmul.mubr.bf16.gmra.mxu0 %v1271
        %v1379 = vpop.f32.mrf.mxu0
        %v1380 = vadd.f32 %v1295, %v1379
        %v1381 = vpop.f32.mrf.mxu0
        %v1382 = vpop.f32.mrf.mxu0
        %v1383 = vadd.f32 %v1295, %v1382
        %v1384 = vpop.f32.mrf.mxu0
        %1385 = vdwg.mxu0
        %vm1386 = vcmask 523264
        %v1387 = vsel %vm1386, %v1380, 0.0
        %1388 = vadd.xlane.f32.xlu0 %v1387
        %v1389 = vpop.xlane.xlu0 %1388
        %v1390 = vsel %vm1386, %v1383, 0.0
        %1391 = vadd.xlane.f32.xlu0 %v1390
        %v1392 = vpop.xlane.xlu0 %1391
        %v1393 = vrcp.pop 64.0
        %v1394 = vmul.f32 %v1389, %v1393
        %v1395 = vmul.f32 %v1392, %v1393
        %v1396 = vsub.f32 %v1380, %v1394
        %v1397 = vsub.f32 %v1383, %v1395
        %v1398 = vmul.f32 %v1396, %v1396
        %v1399 = vmul.f32 %v1397, %v1397
        %v1400 = vsel %vm1386, %v1398, 0.0
        %1401 = vadd.xlane.f32.xlu0 %v1400
        %v1402 = vpop.xlane.xlu0 %1401
        %v1403 = vsel %vm1386, %v1399, 0.0
        %1404 = vadd.xlane.f32.xlu0 %v1403
        %v1405 = vpop.xlane.xlu0 %1404
        %v1406 = vmul.f32 %v1402, %v1393
        %v1407 = vmul.f32 %v1405, %v1393
        %v1408 = vadd.f32 %v1406, 1e-05
        %v1409 = vadd.f32 %v1407, 1e-05
        %v1410 = vrsqrt.pop %v1408
        %v1411 = vrsqrt.pop %v1409
        %v1412 = vmul.f32 %v1396, %v1410
        %v1413 = vmul.f32 %v1397, %v1411
        %v1415 = vlaneseq
        %v1416 = vshrl.u32 %v1415, 7
        %v1417 = vsub.s32 0, %v1416
        %v1418 = vrot.slane %v1289, %v1417
        %v1420 = vmul.f32 %v1412, %v1418
        %v1421 = vmul.f32 %v1413, %v1418
        %v1423 = vlaneseq
        %v1424 = vshrl.u32 %v1423, 7
        %v1425 = vsub.s32 0, %v1424
        %v1426 = vrot.slane %v1290, %v1425
        %v1428 = vadd.f32 %v1420, %v1426
        %v1429 = vadd.f32 %v1421, %v1426
        %v1430 = vmax.f32 %v1428, 0.0
        %v1431 = vmax.f32 %v1429, 0.0
        %v1432 = vpack.c.bf16 %v1431, %v1430
        %v1433 = vld [vmem:[#allocation16] sm:$0xf]
        %v1434 = vld [vmem:[#allocation16 + $0x4] sm:$0xf]
        %v1435 = vld [vmem:[#allocation16 + $0x8] sm:$0xf]
        %v1436 = vld [vmem:[#allocation16 + $0xc] sm:$0xf]
        %v1437 = vld [vmem:[#allocation16 + $0x10] sm:$0xf]
        %v1438 = vld [vmem:[#allocation16 + $0x14] sm:$0xf]
        %v1439 = vld [vmem:[#allocation16 + $0x18] sm:$0xf]
        %v1440 = vld [vmem:[#allocation16 + $0x1c] sm:$0xf]
        %v1441 = vld [vmem:[%s18] sm:$0x1]
        %v1443 = vlaneseq
        %v1444 = vshrl.u32 %v1443, 7
        %v1445 = vsub.s32 0, %v1444
        %v1446 = vrot.slane %v1441, %v1445
        %v1456 = vunpack.c.l.b16 %v1433
        %v1457 = vunpack.c.l.b16 %v1434
        %v1458 = vunpack.c.l.b16 %v1435
        %v1459 = vunpack.c.l.b16 %v1436
        %v1460 = vunpack.c.l.b16 %v1437
        %v1461 = vunpack.c.l.b16 %v1438
        %v1462 = vunpack.c.l.b16 %v1439
        %v1463 = vunpack.c.l.b16 %v1440
        %v1464 = vpack.c.b16 %v1457, %v1456
        %v1465 = vpack.c.b16 %v1459, %v1458
        %v1466 = vpack.c.b16 %v1461, %v1460
        %v1467 = vpack.c.b16 %v1463, %v1462
        %v1473 = vsel %vm1386, %v1432, 0
        %1475 = vmatprep.subr.bf16.mxu0 0
        %1476 = vmatpush1.bf16.msra.mxu0 0
        %1477 = vmatprep.subr.bf16.mxu0 0
        %1478 = vmatpush1.bf16.msra.mxu0 0
        %1479 = vmatprep.subr.bf16.mxu0 0
        %1480 = vmatpush1.bf16.msra.mxu0 0
        %1481 = vmatprep.subr.bf16.mxu0 0
        %1482 = vmatpush1.bf16.msra.mxu0 0
        %1483 = vmatprep.subr.bf16.mxu0 0
        %1484 = vmatpush1.bf16.msra.mxu0 %v1467
        %1485 = vmatprep.subr.bf16.mxu0 0
        %1486 = vmatpush1.bf16.msra.mxu0 %v1466
        %1487 = vmatprep.subr.bf16.mxu0 0
        %1488 = vmatpush1.bf16.msra.mxu0 %v1465
        %1489 = vmatprep.subr.bf16.mxu0 0
        %1490 = vmatpush1.bf16.msra.mxu0 %v1464
        %1491 = vmatprep.subr.bf16.mxu0 0
        %1492 = vmatpush2.bf16.msra.mxu0 0
        %1493 = vmatprep.subr.bf16.mxu0 0
        %1494 = vmatpush2.bf16.msra.mxu0 0
        %1495 = vmatprep.subr.bf16.mxu0 0
        %1496 = vmatpush2.bf16.msra.mxu0 0
        %1497 = vmatprep.subr.bf16.mxu0 0
        %1498 = vmatpush2.bf16.msra.mxu0 0
        %1499 = vmatprep.subr.bf16.mxu0 0
        %1500 = vmatpush2.bf16.msra.mxu0 0
        %1501 = vmatprep.subr.bf16.mxu0 0
        %1502 = vmatpush2.bf16.msra.mxu0 0
        %1503 = vmatprep.subr.bf16.mxu0 0
        %1504 = vmatpush2.bf16.msra.mxu0 0
        %1505 = vmatprep.subr.bf16.mxu0 0
        %1506 = vmatpush2.bf16.msra.mxu0 0
        %1507 = vmatprep.mubr.bf16.mxu0 0
        %1508 = vmatmul.mubr.bf16.gmra.mxu0 %v1473
        %v1509 = vpop.f32.mrf.mxu0
        %v1510 = vadd.f32 %v1446, %v1509
        %v1511 = vpop.f32.mrf.mxu0
        %v1512 = vpop.f32.mrf.mxu0
        %v1513 = vadd.f32 %v1446, %v1512
        %v1514 = vpop.f32.mrf.mxu0
        %1515 = vdwg.mxu0
        %1516 = vst [vmem:[%s715] sm:$0xff] %v1510
        %1517 = vst [vmem:[%s715 + $0x8] sm:$0xff] %v1513
        %s1518 = sand.u32 %s450, 1
        %s1519 = scalar_lea.sflag [#allocation4], %s1518
        %s1520 = sand.u32 %s450, 1
        %s1521 = smul.addr %s1520, 16
        %s1522 = scalar_lea.vmem [#allocation17], %s1521
        // Predicated region
        $region133: #{tpu_custom_call.1} parent=95 // pred_check
          %p1523 = pneg %p460
        $region134: #{tpu_custom_call.1} parent=95 // pred_check_branch
          %1525 = sbr.rel (%p1523) target = $region136
        $region135: #{tpu_custom_call.1} parent=95 // pred_region
          %s1526 = smul.u32 2, %s38
          %s1528 = ssub.s32 256, 256
          %1529 = vsyncadd %s1519, %s1528
          %s1530 = smul.addr %s1526, 128
          %s1531 = scalar_lea.hbm %s19, %s1530
          %s1532 = sshll.u32 %s1522, 4
          %s1533 = int_to_ptr.vmem [resolvable:$true] %s1532
          %1538 = dma.vmem_to_hbm [thread:$0]  %s1533, 256, %s1531, %s1519, 128, 128, 8
        $region136: #{tpu_custom_call.1} parent=95 // pred_fallthru
          _
      $region96: #{tpu_custom_call.1} parent=5 // pred_fallthru
        _
      %p1539 = scmp.le.s32.totalorder 2, %s33
      // Predicated region
      $region137: #{tpu_custom_call.1} parent=5 // pred_check
        %p1540 = pneg %p1539
      $region138: #{tpu_custom_call.1} parent=5 // pred_check_branch
        %1542 = sbr.rel (%p1540) target = $region140
      $region139: #{tpu_custom_call.1} parent=5 // pred_region
        %s1543 = ssub.s32 %s33, 2
        // Predicated region
        $region141: #{tpu_custom_call.1} parent=139 // pred_check
          %p1544 = pneg %p466
        $region142: #{tpu_custom_call.1} parent=139 // pred_check_branch
          %1546 = sbr.rel (%p1544) target = $region144
        $region143: #{tpu_custom_call.1} parent=139 // pred_region
          %s1547 = sand.u32 %s451, 1
          %s1548 = scalar_lea.sflag [#allocation4], %s1547
          %s1549 = sand.u32 %s451, 1
          %s1550 = smul.addr %s1549, 16
          %s1551 = scalar_lea.vmem [#allocation17], %s1550
          %1552 = dma.done %s1548, 256
        $region144: #{tpu_custom_call.1} parent=139 // pred_fallthru
          _
      $region140: #{tpu_custom_call.1} parent=5 // pred_fallthru
        _
    $region6: #{tpu_custom_call.1} parent=1 // loop_footer
      %s37 = sadd.s32 1, %s33
    $region7: #{tpu_custom_call.1} parent=1 // loop_footer_branch
      %32 = sbr.rel target = $region3
    $region8: #{tpu_custom_call.1} parent=1 // loop_exit
      _
    %1553 = vsyncpa [#allocation3], 1
    %s1554 = scalar_lea.sflag [#allocation3], 1
    %1555 = vsyncpa %s1554, 1
    %1556 = vsyncpa [#allocation6], 1
    %1557 = vsyncpa [#allocation9], 1
    %1558 = vsyncpa [#allocation12], 1
    %1559 = vsyncpa [#allocation15], 1
    %1560 = vsyncpa [#allocation4], 1
    %s1561 = scalar_lea.sflag [#allocation4], 1
    %1562 = vsyncpa %s1561, 1

</llo_original>
